<compile_context>
chip_gen: v7x
topology: tpu7x:2x2x1
jax: 0.10.0
libtpu: 0.0.40
codegen_flags: <defaults>
</compile_context>

<pallas_src>
import functools

import jax
import jax.numpy as jnp
from jax.experimental import pallas as pl
from jax.experimental.pallas import tpu as pltpu


def _rnn_fused_kernel(x_ref, h0_ref, wx_ref, wh_ref, bi_ref, wo_ref, bo_ref,
                      out_ref, hfin_ref, hseq_ref, *, T):
    """Single-invocation fused recognition RNN.

    x_ref    : (T, B, obs_dim)     full observation sequence (VMEM)
    h0_ref   : (B, nhidden)        initial hidden state
    wx_ref   : (obs_dim, nhidden)  i2h weight, x-part, pre-transposed
    wh_ref   : (nhidden, nhidden)  i2h weight, h-part, pre-transposed
    bi_ref   : (1, nhidden)        i2h bias
    wo_ref   : (nhidden, out_dim)  h2o weight, pre-transposed
    bo_ref   : (1, out_dim)        h2o bias
    out_ref  : (T, B, out_dim)     out_t for every step (single writeback)
    hfin_ref : (B, nhidden)        final hidden state
    hseq_ref : (T, B, nhidden) f32 scratch: xproj, then per-step h_new
    """
    B = x_ref.shape[1]
    obs_dim = x_ref.shape[2]
    nhidden = wh_ref.shape[0]
    out_dim = wo_ref.shape[1]

    # Phase 1 (parallel, off the critical path): input projection for all T
    # steps as one batched lane-dense matmul; bias folded in here so no
    # per-step broadcast+add survives in the recurrence.
    x_flat = x_ref[...].reshape(T * B, obs_dim).astype(jnp.float32)
    xproj = (jnp.dot(x_flat, wx_ref[...], preferred_element_type=jnp.float32)
             + bi_ref[...])
    hseq_ref[...] = xproj.reshape(T, B, nhidden)

    # Phase 2 (sequential recurrence): h_new = tanh(xproj[t] + h @ Wh).
    def step(t, h):
        h_new = jnp.tanh(
            hseq_ref[t]
            + jnp.dot(h, wh_ref[...], preferred_element_type=jnp.float32))
        hseq_ref[t] = h_new  # overwrite xproj[t] with h_new for phase 3
        return h_new

    h_fin = jax.lax.fori_loop(0, T, step,
                              h0_ref[...].astype(jnp.float32),
                              unroll=True)

    # Phase 3 (parallel): deferred h2o projection — one batched matmul and one
    # lane-dense writeback instead of T tiny (8, 4) masked stores.
    h_all = hseq_ref[...].reshape(T * B, nhidden)
    out = (jnp.dot(h_all, wo_ref[...], preferred_element_type=jnp.float32)
           + bo_ref[...])
    out_ref[...] = out.reshape(T, B, out_dim).astype(out_ref.dtype)
    hfin_ref[...] = h_fin.astype(hfin_ref.dtype)


def prep_params(params):
    """One-time parameter prep: split/transposed weights, 2-D biases.

    Loop-invariant glue hoisted out of the forward path.
    """
    nhidden = params["i2h_b"].shape[0]
    out_dim = params["h2o_b"].shape[0]
    w_i2h_t = jnp.asarray(params["i2h_w"].T)              # (obs_dim+nhidden, nhidden)
    obs_dim = w_i2h_t.shape[0] - nhidden
    return {
        "w_x": w_i2h_t[:obs_dim],                          # (obs_dim, nhidden)
        "w_h": w_i2h_t[obs_dim:],                          # (nhidden, nhidden)
        "b_i": params["i2h_b"].reshape(1, nhidden),        # (1, nhidden)
        "w_o": jnp.asarray(params["h2o_w"].T),             # (nhidden, out_dim)
        "b_o": params["h2o_b"].reshape(1, out_dim),        # (1, out_dim)
    }


def recognition_rnn_sequence(x_seq, h0, prepped):
    """Fused full-sequence recognition pass.

    x_seq: (T, B, obs_dim), h0: (B, nhidden).
    Returns (out_seq (T, B, out_dim), h_final (B, nhidden)); out_seq[t] and the
    hidden-state recurrence match applying module.forward step by step.
    """
    T, B, obs_dim = x_seq.shape
    nhidden = h0.shape[1]
    out_dim = prepped["w_o"].shape[1]

    kernel = functools.partial(_rnn_fused_kernel, T=T)
    vmem = lambda: pl.BlockSpec(memory_space=pltpu.MemorySpace.VMEM)

    out_seq, h_fin = pl.pallas_call(
        kernel,
        out_shape=(
            jax.ShapeDtypeStruct((T, B, out_dim), x_seq.dtype),
            jax.ShapeDtypeStruct((B, nhidden), x_seq.dtype),
        ),
        # No grid: everything (a few KB) is resident in VMEM for one invocation.
        in_specs=[vmem() for _ in range(7)],
        out_specs=(vmem(), vmem()),
        scratch_shapes=[pltpu.VMEM((T, B, nhidden), jnp.float32)],
    )(x_seq, h0, prepped["w_x"], prepped["w_h"], prepped["b_i"],
      prepped["w_o"], prepped["b_o"])
    return out_seq, h_fin


def recognition_rnn_forward(x, h, prepped):
    """Exact PyTorch module.forward semantics: single step, returns (out, h_new)."""
    out_seq, h_new = recognition_rnn_sequence(x[None], h, prepped)
    return out_seq[0], h_new


def init_params(key, out_dim=4, obs_dim=3, nhidden=32, dtype=jnp.float32):
    """Deterministic synthetic init matching nn.Linear parameter shapes."""
    k1, k2, k3, k4 = jax.random.split(key, 4)
    in_dim = obs_dim + nhidden
    bound1 = 1.0 / jnp.sqrt(in_dim)
    bound2 = 1.0 / jnp.sqrt(nhidden)
    return {
        "i2h_w": jax.random.uniform(k1, (nhidden, in_dim), dtype, -bound1, bound1),
        "i2h_b": jax.random.uniform(k2, (nhidden,), dtype, -bound1, bound1),
        "h2o_w": jax.random.uniform(k3, (out_dim, nhidden), dtype, -bound2, bound2),
        "h2o_b": jax.random.uniform(k4, (out_dim,), dtype, -bound2, bound2),
        # h0 parameter (used only by initHidden); zeros like the PyTorch module.
        "h0": jnp.zeros((1, nhidden), dtype),
    }


def init_hidden(params, nbatch):
    return jnp.broadcast_to(params["h0"], (nbatch, params["h0"].shape[1]))


def _cell_reference(x, h, params):
    combined = jnp.concatenate([x, h], axis=1)
    h_new = jnp.tanh(combined @ params["i2h_w"].T + params["i2h_b"])
    out = h_new @ params["h2o_w"].T + params["h2o_b"]
    return out, h_new


def _sequence_reference(x_seq, h0, params):
    def step(h, x):
        out, h_new = _cell_reference(x, h, params)
        return h_new, out
    h_fin, outs = jax.lax.scan(step, h0, x_seq)
    return outs, h_fin


if __name__ == "__main__":
    # B multiple of 8 for dense sublanes; small shapes consistent with the module.
    T, B, obs_dim, nhidden, out_dim = 16, 8, 3, 32, 4
    key = jax.random.PRNGKey(0)
    kx, kp = jax.random.split(key)

    params = init_params(kp, out_dim=out_dim, obs_dim=obs_dim, nhidden=nhidden)
    prepped = prep_params(params)   # one-time split/transpose/reshape, not per step

    x_seq = jax.random.normal(kx, (T, B, obs_dim), jnp.float32)
    h0 = init_hidden(params, B)     # (B, nhidden), zeros

    # Fused whole-sequence recognition pass: one pallas_call, one grid step.
    out_seq, h_fin = recognition_rnn_sequence(x_seq, h0, prepped)
    jax.block_until_ready((out_seq, h_fin))

    out_seq_ref, h_fin_ref = _sequence_reference(x_seq, h0, params)
    assert out_seq.shape == (T, B, out_dim) and h_fin.shape == (B, nhidden)
    assert jnp.allclose(out_seq, out_seq_ref, atol=1e-5, rtol=1e-5)
    assert jnp.allclose(h_fin, h_fin_ref, atol=1e-5, rtol=1e-5)

    # Single-step call: exact PyTorch module.forward(x, h) semantics.
    out1, h1 = recognition_rnn_forward(x_seq[0], h0, prepped)
    jax.block_until_ready((out1, h1))
    out1_ref, h1_ref = _cell_reference(x_seq[0], h0, params)
    assert out1.shape == (B, out_dim) and h1.shape == (B, nhidden)
    assert jnp.allclose(out1, out1_ref, atol=1e-5, rtol=1e-5)
    assert jnp.allclose(h1, h1_ref, atol=1e-5, rtol=1e-5)

    print("KERNEL_OK")
</pallas_src>

<mosaic_0001>
module attributes {stable_mosaic.version = 11 : i64} {
  func.func @_rnn_fused_kernel(%arg0: memref<16x8x3xf32, #tpu.memory_space<vmem>>, %arg1: memref<8x32xf32, #tpu.memory_space<vmem>>, %arg2: memref<3x32xf32, #tpu.memory_space<vmem>>, %arg3: memref<32x32xf32, #tpu.memory_space<vmem>>, %arg4: memref<1x32xf32, #tpu.memory_space<vmem>>, %arg5: memref<32x4xf32, #tpu.memory_space<vmem>>, %arg6: memref<1x4xf32, #tpu.memory_space<vmem>>, %arg7: memref<16x8x4xf32, #tpu.memory_space<vmem>>, %arg8: memref<8x32xf32, #tpu.memory_space<vmem>>, %arg9: memref<16x8x32xf32, #tpu.memory_space<vmem>>) attributes {dimension_semantics = [], scalar_prefetch = 0 : i64, scratch_operands = 1 : i64, tpu.core_type = #tpu.core_type<tc>} {
    %c0 = arith.constant 0 : index
    %c0_0 = arith.constant 0 : index
    %c0_1 = arith.constant 0 : index
    %0 = vector.load %arg0[%c0, %c0_0, %c0_1] : memref<16x8x3xf32, #tpu.memory_space<vmem>>, vector<16x8x3xf32>
    %1 = vector.shape_cast %0 : vector<16x8x3xf32> to vector<128x3xf32>
    %c0_2 = arith.constant 0 : index
    %c0_3 = arith.constant 0 : index
    %2 = vector.load %arg2[%c0_2, %c0_3] : memref<3x32xf32, #tpu.memory_space<vmem>>, vector<3x32xf32>
    %cst = arith.constant dense<0.000000e+00> : vector<128x32xf32>
    %3 = tpu.matmul %1, %2, %cst {dimension_numbers = #tpu.dot_dimension_numbers<[1], [0], [0], [1], [0, 0, 1, 1], [], []>} : vector<128x3xf32>, vector<3x32xf32>, vector<128x32xf32> -> vector<128x32xf32>
    %c0_4 = arith.constant 0 : index
    %c0_5 = arith.constant 0 : index
    %4 = vector.load %arg4[%c0_4, %c0_5] : memref<1x32xf32, #tpu.memory_space<vmem>>, vector<1x32xf32>
    %5 = vector.broadcast %4 : vector<1x32xf32> to vector<128x32xf32>
    %6 = arith.addf %3, %5 : vector<128x32xf32>
    %7 = vector.shape_cast %6 : vector<128x32xf32> to vector<16x8x32xf32>
    %c0_6 = arith.constant 0 : index
    %c0_7 = arith.constant 0 : index
    %c0_8 = arith.constant 0 : index
    %8 = vector.load %arg9[%c0_6, %c0_7, %c0_8] : memref<16x8x32xf32, #tpu.memory_space<vmem>>, vector<16x8x32xf32>
    tpu.vector_store %arg9[%c0_6, %c0_7, %c0_8], %7 {strides = array<i32>} : memref<16x8x32xf32, #tpu.memory_space<vmem>>, vector<16x8x32xf32>,
    %c0_9 = arith.constant 0 : index
    %c0_10 = arith.constant 0 : index
    %9 = vector.load %arg1[%c0_9, %c0_10] : memref<8x32xf32, #tpu.memory_space<vmem>>, vector<8x32xf32>
    %c0_i32 = arith.constant 0 : i32
    %10 = arith.index_cast %c0_i32 : i32 to index
    %c0_11 = arith.constant 0 : index
    %c0_12 = arith.constant 0 : index
    %11 = vector.load %arg9[%10, %c0_11, %c0_12] : memref<16x8x32xf32, #tpu.memory_space<vmem>>, vector<1x8x32xf32>
    %12 = vector.shape_cast %11 : vector<1x8x32xf32> to vector<8x32xf32>
    %c0_13 = arith.constant 0 : index
    %c0_14 = arith.constant 0 : index
    %13 = vector.load %arg3[%c0_13, %c0_14] : memref<32x32xf32, #tpu.memory_space<vmem>>, vector<32x32xf32>
    %cst_15 = arith.constant dense<0.000000e+00> : vector<8x32xf32>
    %14 = tpu.matmul %9, %13, %cst_15 {dimension_numbers = #tpu.dot_dimension_numbers<[1], [0], [0], [1], [0, 0, 1, 1], [], []>} : vector<8x32xf32>, vector<32x32xf32>, vector<8x32xf32> -> vector<8x32xf32>
    %15 = arith.addf %12, %14 : vector<8x32xf32>
    %16 = math.tanh %15 : vector<8x32xf32>
    %17 = arith.index_cast %c0_i32 : i32 to index
    %c0_16 = arith.constant 0 : index
    %c0_17 = arith.constant 0 : index
    %18 = vector.load %arg9[%17, %c0_16, %c0_17] : memref<16x8x32xf32, #tpu.memory_space<vmem>>, vector<1x8x32xf32>
    %19 = vector.shape_cast %18 : vector<1x8x32xf32> to vector<8x32xf32>
    %20 = vector.shape_cast %16 : vector<8x32xf32> to vector<1x8x32xf32>
    tpu.vector_store %arg9[%17, %c0_16, %c0_17], %20 {strides = array<i32>} : memref<16x8x32xf32, #tpu.memory_space<vmem>>, vector<1x8x32xf32>,
    %c1_i32 = arith.constant 1 : i32
    %21 = arith.index_cast %c1_i32 : i32 to index
    %c0_18 = arith.constant 0 : index
    %c0_19 = arith.constant 0 : index
    %22 = vector.load %arg9[%21, %c0_18, %c0_19] : memref<16x8x32xf32, #tpu.memory_space<vmem>>, vector<1x8x32xf32>
    %23 = vector.shape_cast %22 : vector<1x8x32xf32> to vector<8x32xf32>
    %c0_20 = arith.constant 0 : index
    %c0_21 = arith.constant 0 : index
    %24 = vector.load %arg3[%c0_20, %c0_21] : memref<32x32xf32, #tpu.memory_space<vmem>>, vector<32x32xf32>
    %cst_22 = arith.constant dense<0.000000e+00> : vector<8x32xf32>
    %25 = tpu.matmul %16, %24, %cst_22 {dimension_numbers = #tpu.dot_dimension_numbers<[1], [0], [0], [1], [0, 0, 1, 1], [], []>} : vector<8x32xf32>, vector<32x32xf32>, vector<8x32xf32> -> vector<8x32xf32>
    %26 = arith.addf %23, %25 : vector<8x32xf32>
    %27 = math.tanh %26 : vector<8x32xf32>
    %28 = arith.index_cast %c1_i32 : i32 to index
    %c0_23 = arith.constant 0 : index
    %c0_24 = arith.constant 0 : index
    %29 = vector.load %arg9[%28, %c0_23, %c0_24] : memref<16x8x32xf32, #tpu.memory_space<vmem>>, vector<1x8x32xf32>
    %30 = vector.shape_cast %29 : vector<1x8x32xf32> to vector<8x32xf32>
    %31 = vector.shape_cast %27 : vector<8x32xf32> to vector<1x8x32xf32>
    tpu.vector_store %arg9[%28, %c0_23, %c0_24], %31 {strides = array<i32>} : memref<16x8x32xf32, #tpu.memory_space<vmem>>, vector<1x8x32xf32>,
    %c2_i32 = arith.constant 2 : i32
    %32 = arith.index_cast %c2_i32 : i32 to index
    %c0_25 = arith.constant 0 : index
    %c0_26 = arith.constant 0 : index
    %33 = vector.load %arg9[%32, %c0_25, %c0_26] : memref<16x8x32xf32, #tpu.memory_space<vmem>>, vector<1x8x32xf32>
    %34 = vector.shape_cast %33 : vector<1x8x32xf32> to vector<8x32xf32>
    %c0_27 = arith.constant 0 : index
    %c0_28 = arith.constant 0 : index
    %35 = vector.load %arg3[%c0_27, %c0_28] : memref<32x32xf32, #tpu.memory_space<vmem>>, vector<32x32xf32>
    %cst_29 = arith.constant dense<0.000000e+00> : vector<8x32xf32>
    %36 = tpu.matmul %27, %35, %cst_29 {dimension_numbers = #tpu.dot_dimension_numbers<[1], [0], [0], [1], [0, 0, 1, 1], [], []>} : vector<8x32xf32>, vector<32x32xf32>, vector<8x32xf32> -> vector<8x32xf32>
    %37 = arith.addf %34, %36 : vector<8x32xf32>
    %38 = math.tanh %37 : vector<8x32xf32>
    %39 = arith.index_cast %c2_i32 : i32 to index
    %c0_30 = arith.constant 0 : index
    %c0_31 = arith.constant 0 : index
    %40 = vector.load %arg9[%39, %c0_30, %c0_31] : memref<16x8x32xf32, #tpu.memory_space<vmem>>, vector<1x8x32xf32>
    %41 = vector.shape_cast %40 : vector<1x8x32xf32> to vector<8x32xf32>
    %42 = vector.shape_cast %38 : vector<8x32xf32> to vector<1x8x32xf32>
    tpu.vector_store %arg9[%39, %c0_30, %c0_31], %42 {strides = array<i32>} : memref<16x8x32xf32, #tpu.memory_space<vmem>>, vector<1x8x32xf32>,
    %c3_i32 = arith.constant 3 : i32
    %43 = arith.index_cast %c3_i32 : i32 to index
    %c0_32 = arith.constant 0 : index
    %c0_33 = arith.constant 0 : index
    %44 = vector.load %arg9[%43, %c0_32, %c0_33] : memref<16x8x32xf32, #tpu.memory_space<vmem>>, vector<1x8x32xf32>
    %45 = vector.shape_cast %44 : vector<1x8x32xf32> to vector<8x32xf32>
    %c0_34 = arith.constant 0 : index
    %c0_35 = arith.constant 0 : index
    %46 = vector.load %arg3[%c0_34, %c0_35] : memref<32x32xf32, #tpu.memory_space<vmem>>, vector<32x32xf32>
    %cst_36 = arith.constant dense<0.000000e+00> : vector<8x32xf32>
    %47 = tpu.matmul %38, %46, %cst_36 {dimension_numbers = #tpu.dot_dimension_numbers<[1], [0], [0], [1], [0, 0, 1, 1], [], []>} : vector<8x32xf32>, vector<32x32xf32>, vector<8x32xf32> -> vector<8x32xf32>
    %48 = arith.addf %45, %47 : vector<8x32xf32>
    %49 = math.tanh %48 : vector<8x32xf32>
    %50 = arith.index_cast %c3_i32 : i32 to index
    %c0_37 = arith.constant 0 : index
    %c0_38 = arith.constant 0 : index
    %51 = vector.load %arg9[%50, %c0_37, %c0_38] : memref<16x8x32xf32, #tpu.memory_space<vmem>>, vector<1x8x32xf32>
    %52 = vector.shape_cast %51 : vector<1x8x32xf32> to vector<8x32xf32>
    %53 = vector.shape_cast %49 : vector<8x32xf32> to vector<1x8x32xf32>
    tpu.vector_store %arg9[%50, %c0_37, %c0_38], %53 {strides = array<i32>} : memref<16x8x32xf32, #tpu.memory_space<vmem>>, vector<1x8x32xf32>,
    %c4_i32 = arith.constant 4 : i32
    %54 = arith.index_cast %c4_i32 : i32 to index
    %c0_39 = arith.constant 0 : index
    %c0_40 = arith.constant 0 : index
    %55 = vector.load %arg9[%54, %c0_39, %c0_40] : memref<16x8x32xf32, #tpu.memory_space<vmem>>, vector<1x8x32xf32>
    %56 = vector.shape_cast %55 : vector<1x8x32xf32> to vector<8x32xf32>
    %c0_41 = arith.constant 0 : index
    %c0_42 = arith.constant 0 : index
    %57 = vector.load %arg3[%c0_41, %c0_42] : memref<32x32xf32, #tpu.memory_space<vmem>>, vector<32x32xf32>
    %cst_43 = arith.constant dense<0.000000e+00> : vector<8x32xf32>
    %58 = tpu.matmul %49, %57, %cst_43 {dimension_numbers = #tpu.dot_dimension_numbers<[1], [0], [0], [1], [0, 0, 1, 1], [], []>} : vector<8x32xf32>, vector<32x32xf32>, vector<8x32xf32> -> vector<8x32xf32>
    %59 = arith.addf %56, %58 : vector<8x32xf32>
    %60 = math.tanh %59 : vector<8x32xf32>
    %61 = arith.index_cast %c4_i32 : i32 to index
    %c0_44 = arith.constant 0 : index
    %c0_45 = arith.constant 0 : index
    %62 = vector.load %arg9[%61, %c0_44, %c0_45] : memref<16x8x32xf32, #tpu.memory_space<vmem>>, vector<1x8x32xf32>
    %63 = vector.shape_cast %62 : vector<1x8x32xf32> to vector<8x32xf32>
    %64 = vector.shape_cast %60 : vector<8x32xf32> to vector<1x8x32xf32>
    tpu.vector_store %arg9[%61, %c0_44, %c0_45], %64 {strides = array<i32>} : memref<16x8x32xf32, #tpu.memory_space<vmem>>, vector<1x8x32xf32>,
    %c5_i32 = arith.constant 5 : i32
    %65 = arith.index_cast %c5_i32 : i32 to index
    %c0_46 = arith.constant 0 : index
    %c0_47 = arith.constant 0 : index
    %66 = vector.load %arg9[%65, %c0_46, %c0_47] : memref<16x8x32xf32, #tpu.memory_space<vmem>>, vector<1x8x32xf32>
    %67 = vector.shape_cast %66 : vector<1x8x32xf32> to vector<8x32xf32>
    %c0_48 = arith.constant 0 : index
    %c0_49 = arith.constant 0 : index
    %68 = vector.load %arg3[%c0_48, %c0_49] : memref<32x32xf32, #tpu.memory_space<vmem>>, vector<32x32xf32>
    %cst_50 = arith.constant dense<0.000000e+00> : vector<8x32xf32>
    %69 = tpu.matmul %60, %68, %cst_50 {dimension_numbers = #tpu.dot_dimension_numbers<[1], [0], [0], [1], [0, 0, 1, 1], [], []>} : vector<8x32xf32>, vector<32x32xf32>, vector<8x32xf32> -> vector<8x32xf32>
    %70 = arith.addf %67, %69 : vector<8x32xf32>
    %71 = math.tanh %70 : vector<8x32xf32>
    %72 = arith.index_cast %c5_i32 : i32 to index
    %c0_51 = arith.constant 0 : index
    %c0_52 = arith.constant 0 : index
    %73 = vector.load %arg9[%72, %c0_51, %c0_52] : memref<16x8x32xf32, #tpu.memory_space<vmem>>, vector<1x8x32xf32>
    %74 = vector.shape_cast %73 : vector<1x8x32xf32> to vector<8x32xf32>
    %75 = vector.shape_cast %71 : vector<8x32xf32> to vector<1x8x32xf32>
    tpu.vector_store %arg9[%72, %c0_51, %c0_52], %75 {strides = array<i32>} : memref<16x8x32xf32, #tpu.memory_space<vmem>>, vector<1x8x32xf32>,
    %c6_i32 = arith.constant 6 : i32
    %76 = arith.index_cast %c6_i32 : i32 to index
    %c0_53 = arith.constant 0 : index
    %c0_54 = arith.constant 0 : index
    %77 = vector.load %arg9[%76, %c0_53, %c0_54] : memref<16x8x32xf32, #tpu.memory_space<vmem>>, vector<1x8x32xf32>
    %78 = vector.shape_cast %77 : vector<1x8x32xf32> to vector<8x32xf32>
    %c0_55 = arith.constant 0 : index
    %c0_56 = arith.constant 0 : index
    %79 = vector.load %arg3[%c0_55, %c0_56] : memref<32x32xf32, #tpu.memory_space<vmem>>, vector<32x32xf32>
    %cst_57 = arith.constant dense<0.000000e+00> : vector<8x32xf32>
    %80 = tpu.matmul %71, %79, %cst_57 {dimension_numbers = #tpu.dot_dimension_numbers<[1], [0], [0], [1], [0, 0, 1, 1], [], []>} : vector<8x32xf32>, vector<32x32xf32>, vector<8x32xf32> -> vector<8x32xf32>
    %81 = arith.addf %78, %80 : vector<8x32xf32>
    %82 = math.tanh %81 : vector<8x32xf32>
    %83 = arith.index_cast %c6_i32 : i32 to index
    %c0_58 = arith.constant 0 : index
    %c0_59 = arith.constant 0 : index
    %84 = vector.load %arg9[%83, %c0_58, %c0_59] : memref<16x8x32xf32, #tpu.memory_space<vmem>>, vector<1x8x32xf32>
    %85 = vector.shape_cast %84 : vector<1x8x32xf32> to vector<8x32xf32>
    %86 = vector.shape_cast %82 : vector<8x32xf32> to vector<1x8x32xf32>
    tpu.vector_store %arg9[%83, %c0_58, %c0_59], %86 {strides = array<i32>} : memref<16x8x32xf32, #tpu.memory_space<vmem>>, vector<1x8x32xf32>,
    %c7_i32 = arith.constant 7 : i32
    %87 = arith.index_cast %c7_i32 : i32 to index
    %c0_60 = arith.constant 0 : index
    %c0_61 = arith.constant 0 : index
    %88 = vector.load %arg9[%87, %c0_60, %c0_61] : memref<16x8x32xf32, #tpu.memory_space<vmem>>, vector<1x8x32xf32>
    %89 = vector.shape_cast %88 : vector<1x8x32xf32> to vector<8x32xf32>
    %c0_62 = arith.constant 0 : index
    %c0_63 = arith.constant 0 : index
    %90 = vector.load %arg3[%c0_62, %c0_63] : memref<32x32xf32, #tpu.memory_space<vmem>>, vector<32x32xf32>
    %cst_64 = arith.constant dense<0.000000e+00> : vector<8x32xf32>
    %91 = tpu.matmul %82, %90, %cst_64 {dimension_numbers = #tpu.dot_dimension_numbers<[1], [0], [0], [1], [0, 0, 1, 1], [], []>} : vector<8x32xf32>, vector<32x32xf32>, vector<8x32xf32> -> vector<8x32xf32>
    %92 = arith.addf %89, %91 : vector<8x32xf32>
    %93 = math.tanh %92 : vector<8x32xf32>
    %94 = arith.index_cast %c7_i32 : i32 to index
    %c0_65 = arith.constant 0 : index
    %c0_66 = arith.constant 0 : index
    %95 = vector.load %arg9[%94, %c0_65, %c0_66] : memref<16x8x32xf32, #tpu.memory_space<vmem>>, vector<1x8x32xf32>
    %96 = vector.shape_cast %95 : vector<1x8x32xf32> to vector<8x32xf32>
    %97 = vector.shape_cast %93 : vector<8x32xf32> to vector<1x8x32xf32>
    tpu.vector_store %arg9[%94, %c0_65, %c0_66], %97 {strides = array<i32>} : memref<16x8x32xf32, #tpu.memory_space<vmem>>, vector<1x8x32xf32>,
    %c8_i32 = arith.constant 8 : i32
    %98 = arith.index_cast %c8_i32 : i32 to index
    %c0_67 = arith.constant 0 : index
    %c0_68 = arith.constant 0 : index
    %99 = vector.load %arg9[%98, %c0_67, %c0_68] : memref<16x8x32xf32, #tpu.memory_space<vmem>>, vector<1x8x32xf32>
    %100 = vector.shape_cast %99 : vector<1x8x32xf32> to vector<8x32xf32>
    %c0_69 = arith.constant 0 : index
    %c0_70 = arith.constant 0 : index
    %101 = vector.load %arg3[%c0_69, %c0_70] : memref<32x32xf32, #tpu.memory_space<vmem>>, vector<32x32xf32>
    %cst_71 = arith.constant dense<0.000000e+00> : vector<8x32xf32>
    %102 = tpu.matmul %93, %101, %cst_71 {dimension_numbers = #tpu.dot_dimension_numbers<[1], [0], [0], [1], [0, 0, 1, 1], [], []>} : vector<8x32xf32>, vector<32x32xf32>, vector<8x32xf32> -> vector<8x32xf32>
    %103 = arith.addf %100, %102 : vector<8x32xf32>
    %104 = math.tanh %103 : vector<8x32xf32>
    %105 = arith.index_cast %c8_i32 : i32 to index
    %c0_72 = arith.constant 0 : index
    %c0_73 = arith.constant 0 : index
    %106 = vector.load %arg9[%105, %c0_72, %c0_73] : memref<16x8x32xf32, #tpu.memory_space<vmem>>, vector<1x8x32xf32>
    %107 = vector.shape_cast %106 : vector<1x8x32xf32> to vector<8x32xf32>
    %108 = vector.shape_cast %104 : vector<8x32xf32> to vector<1x8x32xf32>
    tpu.vector_store %arg9[%105, %c0_72, %c0_73], %108 {strides = array<i32>} : memref<16x8x32xf32, #tpu.memory_space<vmem>>, vector<1x8x32xf32>,
    %c9_i32 = arith.constant 9 : i32
    %109 = arith.index_cast %c9_i32 : i32 to index
    %c0_74 = arith.constant 0 : index
    %c0_75 = arith.constant 0 : index
    %110 = vector.load %arg9[%109, %c0_74, %c0_75] : memref<16x8x32xf32, #tpu.memory_space<vmem>>, vector<1x8x32xf32>
    %111 = vector.shape_cast %110 : vector<1x8x32xf32> to vector<8x32xf32>
    %c0_76 = arith.constant 0 : index
    %c0_77 = arith.constant 0 : index
    %112 = vector.load %arg3[%c0_76, %c0_77] : memref<32x32xf32, #tpu.memory_space<vmem>>, vector<32x32xf32>
    %cst_78 = arith.constant dense<0.000000e+00> : vector<8x32xf32>
    %113 = tpu.matmul %104, %112, %cst_78 {dimension_numbers = #tpu.dot_dimension_numbers<[1], [0], [0], [1], [0, 0, 1, 1], [], []>} : vector<8x32xf32>, vector<32x32xf32>, vector<8x32xf32> -> vector<8x32xf32>
    %114 = arith.addf %111, %113 : vector<8x32xf32>
    %115 = math.tanh %114 : vector<8x32xf32>
    %116 = arith.index_cast %c9_i32 : i32 to index
    %c0_79 = arith.constant 0 : index
    %c0_80 = arith.constant 0 : index
    %117 = vector.load %arg9[%116, %c0_79, %c0_80] : memref<16x8x32xf32, #tpu.memory_space<vmem>>, vector<1x8x32xf32>
    %118 = vector.shape_cast %117 : vector<1x8x32xf32> to vector<8x32xf32>
    %119 = vector.shape_cast %115 : vector<8x32xf32> to vector<1x8x32xf32>
    tpu.vector_store %arg9[%116, %c0_79, %c0_80], %119 {strides = array<i32>} : memref<16x8x32xf32, #tpu.memory_space<vmem>>, vector<1x8x32xf32>,
    %c10_i32 = arith.constant 10 : i32
    %120 = arith.index_cast %c10_i32 : i32 to index
    %c0_81 = arith.constant 0 : index
    %c0_82 = arith.constant 0 : index
    %121 = vector.load %arg9[%120, %c0_81, %c0_82] : memref<16x8x32xf32, #tpu.memory_space<vmem>>, vector<1x8x32xf32>
    %122 = vector.shape_cast %121 : vector<1x8x32xf32> to vector<8x32xf32>
    %c0_83 = arith.constant 0 : index
    %c0_84 = arith.constant 0 : index
    %123 = vector.load %arg3[%c0_83, %c0_84] : memref<32x32xf32, #tpu.memory_space<vmem>>, vector<32x32xf32>
    %cst_85 = arith.constant dense<0.000000e+00> : vector<8x32xf32>
    %124 = tpu.matmul %115, %123, %cst_85 {dimension_numbers = #tpu.dot_dimension_numbers<[1], [0], [0], [1], [0, 0, 1, 1], [], []>} : vector<8x32xf32>, vector<32x32xf32>, vector<8x32xf32> -> vector<8x32xf32>
    %125 = arith.addf %122, %124 : vector<8x32xf32>
    %126 = math.tanh %125 : vector<8x32xf32>
    %127 = arith.index_cast %c10_i32 : i32 to index
    %c0_86 = arith.constant 0 : index
    %c0_87 = arith.constant 0 : index
    %128 = vector.load %arg9[%127, %c0_86, %c0_87] : memref<16x8x32xf32, #tpu.memory_space<vmem>>, vector<1x8x32xf32>
    %129 = vector.shape_cast %128 : vector<1x8x32xf32> to vector<8x32xf32>
    %130 = vector.shape_cast %126 : vector<8x32xf32> to vector<1x8x32xf32>
    tpu.vector_store %arg9[%127, %c0_86, %c0_87], %130 {strides = array<i32>} : memref<16x8x32xf32, #tpu.memory_space<vmem>>, vector<1x8x32xf32>,
    %c11_i32 = arith.constant 11 : i32
    %131 = arith.index_cast %c11_i32 : i32 to index
    %c0_88 = arith.constant 0 : index
    %c0_89 = arith.constant 0 : index
    %132 = vector.load %arg9[%131, %c0_88, %c0_89] : memref<16x8x32xf32, #tpu.memory_space<vmem>>, vector<1x8x32xf32>
    %133 = vector.shape_cast %132 : vector<1x8x32xf32> to vector<8x32xf32>
    %c0_90 = arith.constant 0 : index
    %c0_91 = arith.constant 0 : index
    %134 = vector.load %arg3[%c0_90, %c0_91] : memref<32x32xf32, #tpu.memory_space<vmem>>, vector<32x32xf32>
    %cst_92 = arith.constant dense<0.000000e+00> : vector<8x32xf32>
    %135 = tpu.matmul %126, %134, %cst_92 {dimension_numbers = #tpu.dot_dimension_numbers<[1], [0], [0], [1], [0, 0, 1, 1], [], []>} : vector<8x32xf32>, vector<32x32xf32>, vector<8x32xf32> -> vector<8x32xf32>
    %136 = arith.addf %133, %135 : vector<8x32xf32>
    %137 = math.tanh %136 : vector<8x32xf32>
    %138 = arith.index_cast %c11_i32 : i32 to index
    %c0_93 = arith.constant 0 : index
    %c0_94 = arith.constant 0 : index
    %139 = vector.load %arg9[%138, %c0_93, %c0_94] : memref<16x8x32xf32, #tpu.memory_space<vmem>>, vector<1x8x32xf32>
    %140 = vector.shape_cast %139 : vector<1x8x32xf32> to vector<8x32xf32>
    %141 = vector.shape_cast %137 : vector<8x32xf32> to vector<1x8x32xf32>
    tpu.vector_store %arg9[%138, %c0_93, %c0_94], %141 {strides = array<i32>} : memref<16x8x32xf32, #tpu.memory_space<vmem>>, vector<1x8x32xf32>,
    %c12_i32 = arith.constant 12 : i32
    %142 = arith.index_cast %c12_i32 : i32 to index
    %c0_95 = arith.constant 0 : index
    %c0_96 = arith.constant 0 : index
    %143 = vector.load %arg9[%142, %c0_95, %c0_96] : memref<16x8x32xf32, #tpu.memory_space<vmem>>, vector<1x8x32xf32>
    %144 = vector.shape_cast %143 : vector<1x8x32xf32> to vector<8x32xf32>
    %c0_97 = arith.constant 0 : index
    %c0_98 = arith.constant 0 : index
    %145 = vector.load %arg3[%c0_97, %c0_98] : memref<32x32xf32, #tpu.memory_space<vmem>>, vector<32x32xf32>
    %cst_99 = arith.constant dense<0.000000e+00> : vector<8x32xf32>
    %146 = tpu.matmul %137, %145, %cst_99 {dimension_numbers = #tpu.dot_dimension_numbers<[1], [0], [0], [1], [0, 0, 1, 1], [], []>} : vector<8x32xf32>, vector<32x32xf32>, vector<8x32xf32> -> vector<8x32xf32>
    %147 = arith.addf %144, %146 : vector<8x32xf32>
    %148 = math.tanh %147 : vector<8x32xf32>
    %149 = arith.index_cast %c12_i32 : i32 to index
    %c0_100 = arith.constant 0 : index
    %c0_101 = arith.constant 0 : index
    %150 = vector.load %arg9[%149, %c0_100, %c0_101] : memref<16x8x32xf32, #tpu.memory_space<vmem>>, vector<1x8x32xf32>
    %151 = vector.shape_cast %150 : vector<1x8x32xf32> to vector<8x32xf32>
    %152 = vector.shape_cast %148 : vector<8x32xf32> to vector<1x8x32xf32>
    tpu.vector_store %arg9[%149, %c0_100, %c0_101], %152 {strides = array<i32>} : memref<16x8x32xf32, #tpu.memory_space<vmem>>, vector<1x8x32xf32>,
    %c13_i32 = arith.constant 13 : i32
    %153 = arith.index_cast %c13_i32 : i32 to index
    %c0_102 = arith.constant 0 : index
    %c0_103 = arith.constant 0 : index
    %154 = vector.load %arg9[%153, %c0_102, %c0_103] : memref<16x8x32xf32, #tpu.memory_space<vmem>>, vector<1x8x32xf32>
    %155 = vector.shape_cast %154 : vector<1x8x32xf32> to vector<8x32xf32>
    %c0_104 = arith.constant 0 : index
    %c0_105 = arith.constant 0 : index
    %156 = vector.load %arg3[%c0_104, %c0_105] : memref<32x32xf32, #tpu.memory_space<vmem>>, vector<32x32xf32>
    %cst_106 = arith.constant dense<0.000000e+00> : vector<8x32xf32>
    %157 = tpu.matmul %148, %156, %cst_106 {dimension_numbers = #tpu.dot_dimension_numbers<[1], [0], [0], [1], [0, 0, 1, 1], [], []>} : vector<8x32xf32>, vector<32x32xf32>, vector<8x32xf32> -> vector<8x32xf32>
    %158 = arith.addf %155, %157 : vector<8x32xf32>
    %159 = math.tanh %158 : vector<8x32xf32>
    %160 = arith.index_cast %c13_i32 : i32 to index
    %c0_107 = arith.constant 0 : index
    %c0_108 = arith.constant 0 : index
    %161 = vector.load %arg9[%160, %c0_107, %c0_108] : memref<16x8x32xf32, #tpu.memory_space<vmem>>, vector<1x8x32xf32>
    %162 = vector.shape_cast %161 : vector<1x8x32xf32> to vector<8x32xf32>
    %163 = vector.shape_cast %159 : vector<8x32xf32> to vector<1x8x32xf32>
    tpu.vector_store %arg9[%160, %c0_107, %c0_108], %163 {strides = array<i32>} : memref<16x8x32xf32, #tpu.memory_space<vmem>>, vector<1x8x32xf32>,
    %c14_i32 = arith.constant 14 : i32
    %164 = arith.index_cast %c14_i32 : i32 to index
    %c0_109 = arith.constant 0 : index
    %c0_110 = arith.constant 0 : index
    %165 = vector.load %arg9[%164, %c0_109, %c0_110] : memref<16x8x32xf32, #tpu.memory_space<vmem>>, vector<1x8x32xf32>
    %166 = vector.shape_cast %165 : vector<1x8x32xf32> to vector<8x32xf32>
    %c0_111 = arith.constant 0 : index
    %c0_112 = arith.constant 0 : index
    %167 = vector.load %arg3[%c0_111, %c0_112] : memref<32x32xf32, #tpu.memory_space<vmem>>, vector<32x32xf32>
    %cst_113 = arith.constant dense<0.000000e+00> : vector<8x32xf32>
    %168 = tpu.matmul %159, %167, %cst_113 {dimension_numbers = #tpu.dot_dimension_numbers<[1], [0], [0], [1], [0, 0, 1, 1], [], []>} : vector<8x32xf32>, vector<32x32xf32>, vector<8x32xf32> -> vector<8x32xf32>
    %169 = arith.addf %166, %168 : vector<8x32xf32>
    %170 = math.tanh %169 : vector<8x32xf32>
    %171 = arith.index_cast %c14_i32 : i32 to index
    %c0_114 = arith.constant 0 : index
    %c0_115 = arith.constant 0 : index
    %172 = vector.load %arg9[%171, %c0_114, %c0_115] : memref<16x8x32xf32, #tpu.memory_space<vmem>>, vector<1x8x32xf32>
    %173 = vector.shape_cast %172 : vector<1x8x32xf32> to vector<8x32xf32>
    %174 = vector.shape_cast %170 : vector<8x32xf32> to vector<1x8x32xf32>
    tpu.vector_store %arg9[%171, %c0_114, %c0_115], %174 {strides = array<i32>} : memref<16x8x32xf32, #tpu.memory_space<vmem>>, vector<1x8x32xf32>,
    %c15_i32 = arith.constant 15 : i32
    %175 = arith.index_cast %c15_i32 : i32 to index
    %c0_116 = arith.constant 0 : index
    %c0_117 = arith.constant 0 : index
    %176 = vector.load %arg9[%175, %c0_116, %c0_117] : memref<16x8x32xf32, #tpu.memory_space<vmem>>, vector<1x8x32xf32>
    %177 = vector.shape_cast %176 : vector<1x8x32xf32> to vector<8x32xf32>
    %c0_118 = arith.constant 0 : index
    %c0_119 = arith.constant 0 : index
    %178 = vector.load %arg3[%c0_118, %c0_119] : memref<32x32xf32, #tpu.memory_space<vmem>>, vector<32x32xf32>
    %cst_120 = arith.constant dense<0.000000e+00> : vector<8x32xf32>
    %179 = tpu.matmul %170, %178, %cst_120 {dimension_numbers = #tpu.dot_dimension_numbers<[1], [0], [0], [1], [0, 0, 1, 1], [], []>} : vector<8x32xf32>, vector<32x32xf32>, vector<8x32xf32> -> vector<8x32xf32>
    %180 = arith.addf %177, %179 : vector<8x32xf32>
    %181 = math.tanh %180 : vector<8x32xf32>
    %182 = arith.index_cast %c15_i32 : i32 to index
    %c0_121 = arith.constant 0 : index
    %c0_122 = arith.constant 0 : index
    %183 = vector.load %arg9[%182, %c0_121, %c0_122] : memref<16x8x32xf32, #tpu.memory_space<vmem>>, vector<1x8x32xf32>
    %184 = vector.shape_cast %183 : vector<1x8x32xf32> to vector<8x32xf32>
    %185 = vector.shape_cast %181 : vector<8x32xf32> to vector<1x8x32xf32>
    tpu.vector_store %arg9[%182, %c0_121, %c0_122], %185 {strides = array<i32>} : memref<16x8x32xf32, #tpu.memory_space<vmem>>, vector<1x8x32xf32>,
    %c16_i32 = arith.constant 16 : i32
    %c0_123 = arith.constant 0 : index
    %c0_124 = arith.constant 0 : index
    %c0_125 = arith.constant 0 : index
    %186 = vector.load %arg9[%c0_123, %c0_124, %c0_125] : memref<16x8x32xf32, #tpu.memory_space<vmem>>, vector<16x8x32xf32>
    %187 = vector.shape_cast %186 : vector<16x8x32xf32> to vector<128x32xf32>
    %c0_126 = arith.constant 0 : index
    %c0_127 = arith.constant 0 : index
    %188 = vector.load %arg5[%c0_126, %c0_127] : memref<32x4xf32, #tpu.memory_space<vmem>>, vector<32x4xf32>
    %cst_128 = arith.constant dense<0.000000e+00> : vector<128x4xf32>
    %189 = tpu.matmul %187, %188, %cst_128 {dimension_numbers = #tpu.dot_dimension_numbers<[1], [0], [0], [1], [0, 0, 1, 1], [], []>} : vector<128x32xf32>, vector<32x4xf32>, vector<128x4xf32> -> vector<128x4xf32>
    %c0_129 = arith.constant 0 : index
    %c0_130 = arith.constant 0 : index
    %190 = vector.load %arg6[%c0_129, %c0_130] : memref<1x4xf32, #tpu.memory_space<vmem>>, vector<1x4xf32>
    %191 = vector.broadcast %190 : vector<1x4xf32> to vector<128x4xf32>
    %192 = arith.addf %189, %191 : vector<128x4xf32>
    %193 = vector.shape_cast %192 : vector<128x4xf32> to vector<16x8x4xf32>
    %c0_131 = arith.constant 0 : index
    %c0_132 = arith.constant 0 : index
    %c0_133 = arith.constant 0 : index
    %194 = vector.load %arg7[%c0_131, %c0_132, %c0_133] : memref<16x8x4xf32, #tpu.memory_space<vmem>>, vector<16x8x4xf32>
    tpu.vector_store %arg7[%c0_131, %c0_132, %c0_133], %193 {strides = array<i32>} : memref<16x8x4xf32, #tpu.memory_space<vmem>>, vector<16x8x4xf32>,
    %c0_134 = arith.constant 0 : index
    %c0_135 = arith.constant 0 : index
    %195 = vector.load %arg8[%c0_134, %c0_135] : memref<8x32xf32, #tpu.memory_space<vmem>>, vector<8x32xf32>
    tpu.vector_store %arg8[%c0_134, %c0_135], %181 {strides = array<i32>} : memref<8x32xf32, #tpu.memory_space<vmem>>, vector<8x32xf32>,
    return
  }
}

</mosaic_0001>

<llo_original>
// kernel: tpu_custom_call.1
$region0: #{tpu_custom_call.1}
  #allocation0 [shape = 'u32[]', space=smem, size = 0x4, offset = 0x4, fixed_abs, tag = 'smem constant byte address 0x4 - core index']
  #allocation1 [shape = 'u32[144,128]{1,0:T(1,128)}', space=vmem, size = 0x12000, scoped, tag = 'internal scratch']
  #allocation2 [shape = 'f32[16,8,32]{2,1,0:T(8,128)}', space=vmem, size = 0x10000, scoped, tag = 'scratch operand']
  %s0 = inlined_call_operand.vmem [shape: f32[16,8,3], index: 0, kind: input, shape index: {}]
  %s1 = inlined_call_operand.vmem [shape: f32[8,32], index: 1, kind: input, shape index: {}]
  %s2 = inlined_call_operand.vmem [shape: f32[3,32], index: 2, kind: input, shape index: {}]
  %s3 = inlined_call_operand.vmem [shape: f32[32,32], index: 3, kind: input, shape index: {}]
  %s4 = inlined_call_operand.vmem [shape: f32[1,32], index: 4, kind: input, shape index: {}]
  %s5 = inlined_call_operand.vmem [shape: f32[32,4], index: 5, kind: input, shape index: {}]
  %s6 = inlined_call_operand.vmem [shape: f32[1,4], index: 6, kind: input, shape index: {}]
  %s7 = inlined_call_operand.vmem [shape: f32[16,8,4], index: 7, kind: output, shape index: {0}]
  %s8 = inlined_call_operand.hbm [shape: f32[8,32], index: 8, kind: output, shape index: {1}]
  %9 = xla_tuple %s7, %s8
  %s10 = sld [smem:[#allocation0]]
  $region46: #{tpu_custom_call.1} parent=0
    _
  %s12 = ssub.s32 1, %s10
  %s13 = scalar_select 0, %s12, %s10
  $region1: #{tpu_custom_call.1} parent=0
    #allocation3 [shape = 'u8[4096]{0}', space=vmem, size = 0x1000, scoped, tag = 'output window, operand 1, single buffered']
    #allocation4 [shape = 's32[1]{0}', space=sflag, size = 0x4, scoped, tag = 'scoped memory for tpu_custom_call.1']
    %14 = vsyncpa [#allocation4], 0
    // Predicated region
    $region2: #{tpu_custom_call.1} parent=1 // pred_check
      _
    $region3: #{tpu_custom_call.1} parent=1 // pred_check_branch
      %16 = sbr.rel (0) target = $region5
    $region4: #{tpu_custom_call.1} parent=1 // pred_region
      _
    $region5: #{tpu_custom_call.1} parent=1 // pred_fallthru
      _
    // Predicated region
    $region6: #{tpu_custom_call.1} parent=1 // pred_check
      _
    $region7: #{tpu_custom_call.1} parent=1 // pred_check_branch
      %18 = sbr.rel (0) target = $region9
    $region8: #{tpu_custom_call.1} parent=1 // pred_region
      _
    $region9: #{tpu_custom_call.1} parent=1 // pred_fallthru
      _
    // Predicated region
    $region10: #{tpu_custom_call.1} parent=1 // pred_check
      _
    $region11: #{tpu_custom_call.1} parent=1 // pred_check_branch
      %20 = sbr.rel (0) target = $region13
    $region12: #{tpu_custom_call.1} parent=1 // pred_region
      _
    $region13: #{tpu_custom_call.1} parent=1 // pred_fallthru
      _
    // Predicated region
    $region14: #{tpu_custom_call.1} parent=1 // pred_check
      _
    $region15: #{tpu_custom_call.1} parent=1 // pred_check_branch
      %22 = sbr.rel (0) target = $region17
    $region16: #{tpu_custom_call.1} parent=1 // pred_region
      _
    $region17: #{tpu_custom_call.1} parent=1 // pred_fallthru
      _
    // Predicated region
    $region18: #{tpu_custom_call.1} parent=1 // pred_check
      _
    $region19: #{tpu_custom_call.1} parent=1 // pred_check_branch
      %24 = sbr.rel (0) target = $region21
    $region20: #{tpu_custom_call.1} parent=1 // pred_region
      _
    $region21: #{tpu_custom_call.1} parent=1 // pred_fallthru
      _
    // Predicated region
    $region22: #{tpu_custom_call.1} parent=1 // pred_check
      _
    $region23: #{tpu_custom_call.1} parent=1 // pred_check_branch
      %26 = sbr.rel (0) target = $region25
    $region24: #{tpu_custom_call.1} parent=1 // pred_region
      _
    $region25: #{tpu_custom_call.1} parent=1 // pred_fallthru
      _
    // Predicated region
    $region26: #{tpu_custom_call.1} parent=1 // pred_check
      _
    $region27: #{tpu_custom_call.1} parent=1 // pred_check_branch
      %28 = sbr.rel (0) target = $region29
    $region28: #{tpu_custom_call.1} parent=1 // pred_region
      _
    $region29: #{tpu_custom_call.1} parent=1 // pred_fallthru
      _
    %v29 = vld [vmem:[%s0] sm:$0xff]
    %v30 = vld [vmem:[%s0 + $0x8] sm:$0xff]
    %v31 = vld [vmem:[%s0 + $0x10] sm:$0xff]
    %v32 = vld [vmem:[%s0 + $0x18] sm:$0xff]
    %v33 = vld [vmem:[%s0 + $0x20] sm:$0xff]
    %v34 = vld [vmem:[%s0 + $0x28] sm:$0xff]
    %v35 = vld [vmem:[%s0 + $0x30] sm:$0xff]
    %v36 = vld [vmem:[%s0 + $0x38] sm:$0xff]
    %v37 = vld [vmem:[%s0 + $0x40] sm:$0xff]
    %v38 = vld [vmem:[%s0 + $0x48] sm:$0xff]
    %v39 = vld [vmem:[%s0 + $0x50] sm:$0xff]
    %v40 = vld [vmem:[%s0 + $0x58] sm:$0xff]
    %v41 = vld [vmem:[%s0 + $0x60] sm:$0xff]
    %v42 = vld [vmem:[%s0 + $0x68] sm:$0xff]
    %v43 = vld [vmem:[%s0 + $0x70] sm:$0xff]
    %v44 = vld [vmem:[%s0 + $0x78] sm:$0xff]
    %v45 = vld [vmem:[%s2] sm:$0x7]
    %v46 = vld [vmem:[%s4] sm:$0x1]
    %v48 = vlaneseq
    %v49 = vshrl.u32 %v48, 7
    %v50 = vsub.s32 0, %v49
    %v51 = vrot.slane %v46, %v50
    %vm53 = vcmask 23552
    %v55 = vsel %vm53, %v29, 0
    %v58 = vsel %vm53, %v30, 0
    %v61 = vsel %vm53, %v31, 0
    %v64 = vsel %vm53, %v32, 0
    %v67 = vsel %vm53, %v33, 0
    %v70 = vsel %vm53, %v34, 0
    %v73 = vsel %vm53, %v35, 0
    %v76 = vsel %vm53, %v36, 0
    %v79 = vsel %vm53, %v37, 0
    %v82 = vsel %vm53, %v38, 0
    %v85 = vsel %vm53, %v39, 0
    %v88 = vsel %vm53, %v40, 0
    %v91 = vsel %vm53, %v41, 0
    %v94 = vsel %vm53, %v42, 0
    %v97 = vsel %vm53, %v43, 0
    %v100 = vsel %vm53, %v44, 0
    %vm102 = vcmask 1042432
    %v104 = vsel %vm102, %v45, 0
    %106 = vmatprep.subr.mxu0 0.0
    %107 = vmatpush1.msra.mxu0 %v104
    %108 = vmatprep.subr.mxu0 0.0
    %109 = vmatpush1.msra.mxu0 0.0
    %110 = vmatprep.subr.mxu0 0.0
    %111 = vmatpush1.msra.mxu0 0.0
    %112 = vmatprep.subr.mxu0 0.0
    %113 = vmatpush1.msra.mxu0 0.0
    %114 = vmatprep.subr.mxu0 0.0
    %115 = vmatpush1.msra.mxu0 0.0
    %116 = vmatprep.subr.mxu0 0.0
    %117 = vmatpush1.msra.mxu0 0.0
    %118 = vmatprep.subr.mxu0 0.0
    %119 = vmatpush1.msra.mxu0 0.0
    %120 = vmatprep.subr.mxu0 0.0
    %121 = vmatpush1.msra.mxu0 0.0
    %122 = vmatprep.subr.mxu0 0.0
    %123 = vmatpush1.msra.mxu0 0.0
    %124 = vmatprep.subr.mxu0 0.0
    %125 = vmatpush1.msra.mxu0 0.0
    %126 = vmatprep.subr.mxu0 0.0
    %127 = vmatpush1.msra.mxu0 0.0
    %128 = vmatprep.subr.mxu0 0.0
    %129 = vmatpush1.msra.mxu0 0.0
    %130 = vmatprep.subr.mxu0 0.0
    %131 = vmatpush1.msra.mxu0 0.0
    %132 = vmatprep.subr.mxu0 0.0
    %133 = vmatpush1.msra.mxu0 0.0
    %134 = vmatprep.subr.mxu0 0.0
    %135 = vmatpush1.msra.mxu0 0.0
    %136 = vmatprep.subr.mxu0 0.0
    %137 = vmatpush1.msra.mxu0 0.0
    %138 = vmatprep.subr.mxu0 0.0
    %139 = vmatpush1.msra.mxu0 0.0
    %140 = vmatprep.subr.mxu0 0.0
    %141 = vmatpush1.msra.mxu0 0.0
    %142 = vmatprep.subr.mxu0 0.0
    %143 = vmatpush1.msra.mxu0 0.0
    %144 = vmatprep.subr.mxu0 0.0
    %145 = vmatpush1.msra.mxu0 0.0
    %146 = vmatprep.subr.mxu0 0.0
    %147 = vmatpush1.msra.mxu0 0.0
    %148 = vmatprep.subr.mxu0 0.0
    %149 = vmatpush1.msra.mxu0 0.0
    %150 = vmatprep.subr.mxu0 0.0
    %151 = vmatpush1.msra.mxu0 0.0
    %152 = vmatprep.subr.mxu0 0.0
    %153 = vmatpush1.msra.mxu0 0.0
    %154 = vmatprep.subr.mxu0 0.0
    %155 = vmatpush1.msra.mxu0 0.0
    %156 = vmatprep.subr.mxu0 0.0
    %157 = vmatpush1.msra.mxu0 0.0
    %158 = vmatprep.subr.mxu0 0.0
    %159 = vmatpush1.msra.mxu0 0.0
    %160 = vmatprep.subr.mxu0 0.0
    %161 = vmatpush1.msra.mxu0 0.0
    %162 = vmatprep.subr.mxu0 0.0
    %163 = vmatpush1.msra.mxu0 0.0
    %164 = vmatprep.subr.mxu0 0.0
    %165 = vmatpush1.msra.mxu0 0.0
    %166 = vmatprep.subr.mxu0 0.0
    %167 = vmatpush1.msra.mxu0 0.0
    %168 = vmatprep.subr.mxu0 0.0
    %169 = vmatpush1.msra.mxu0 0.0
    %170 = vmatprep.mubr.f32.mxu0 0.0
    %171 = vmatmul.mubr.f32.gmra.mrb[0].mxu0 %v55
    %v172 = vpop.f32.mrb[0].mxu0
    %v173 = vadd.f32 %v51, %v172
    %v174 = vpop.f32.mrb[0].mxu0
    %175 = vmatprep.mubr.f32.mxu0 0.0
    %176 = vmatmul.mubr.f32.gmra.mrb[0].mxu0 %v58
    %v177 = vpop.f32.mrb[0].mxu0
    %v178 = vadd.f32 %v51, %v177
    %v179 = vpop.f32.mrb[0].mxu0
    %180 = vmatprep.mubr.f32.mxu0 0.0
    %181 = vmatmul.mubr.f32.gmra.mrb[0].mxu0 %v61
    %v182 = vpop.f32.mrb[0].mxu0
    %v183 = vadd.f32 %v51, %v182
    %v184 = vpop.f32.mrb[0].mxu0
    %185 = vmatprep.mubr.f32.mxu0 0.0
    %186 = vmatmul.mubr.f32.gmra.mrb[0].mxu0 %v64
    %v187 = vpop.f32.mrb[0].mxu0
    %v188 = vadd.f32 %v51, %v187
    %v189 = vpop.f32.mrb[0].mxu0
    %190 = vmatprep.mubr.f32.mxu0 0.0
    %191 = vmatmul.mubr.f32.gmra.mrb[0].mxu0 %v67
    %v192 = vpop.f32.mrb[0].mxu0
    %v193 = vadd.f32 %v51, %v192
    %v194 = vpop.f32.mrb[0].mxu0
    %195 = vmatprep.mubr.f32.mxu0 0.0
    %196 = vmatmul.mubr.f32.gmra.mrb[0].mxu0 %v70
    %v197 = vpop.f32.mrb[0].mxu0
    %v198 = vadd.f32 %v51, %v197
    %v199 = vpop.f32.mrb[0].mxu0
    %200 = vmatprep.mubr.f32.mxu0 0.0
    %201 = vmatmul.mubr.f32.gmra.mrb[0].mxu0 %v73
    %v202 = vpop.f32.mrb[0].mxu0
    %v203 = vadd.f32 %v51, %v202
    %v204 = vpop.f32.mrb[0].mxu0
    %205 = vmatprep.mubr.f32.mxu0 0.0
    %206 = vmatmul.mubr.f32.gmra.mrb[0].mxu0 %v76
    %v207 = vpop.f32.mrb[0].mxu0
    %v208 = vadd.f32 %v51, %v207
    %v209 = vpop.f32.mrb[0].mxu0
    %210 = vmatprep.mubr.f32.mxu0 0.0
    %211 = vmatmul.mubr.f32.gmra.mrb[0].mxu0 %v79
    %v212 = vpop.f32.mrb[0].mxu0
    %v213 = vadd.f32 %v51, %v212
    %v214 = vpop.f32.mrb[0].mxu0
    %215 = vmatprep.mubr.f32.mxu0 0.0
    %216 = vmatmul.mubr.f32.gmra.mrb[0].mxu0 %v82
    %v217 = vpop.f32.mrb[0].mxu0
    %v218 = vadd.f32 %v51, %v217
    %v219 = vpop.f32.mrb[0].mxu0
    %220 = vmatprep.mubr.f32.mxu0 0.0
    %221 = vmatmul.mubr.f32.gmra.mrb[0].mxu0 %v85
    %v222 = vpop.f32.mrb[0].mxu0
    %v223 = vadd.f32 %v51, %v222
    %v224 = vpop.f32.mrb[0].mxu0
    %225 = vmatprep.mubr.f32.mxu0 0.0
    %226 = vmatmul.mubr.f32.gmra.mrb[0].mxu0 %v88
    %v227 = vpop.f32.mrb[0].mxu0
    %v228 = vadd.f32 %v51, %v227
    %v229 = vpop.f32.mrb[0].mxu0
    %230 = vmatprep.mubr.f32.mxu0 0.0
    %231 = vmatmul.mubr.f32.gmra.mrb[0].mxu0 %v91
    %v232 = vpop.f32.mrb[0].mxu0
    %v233 = vadd.f32 %v51, %v232
    %v234 = vpop.f32.mrb[0].mxu0
    %235 = vmatprep.mubr.f32.mxu0 0.0
    %236 = vmatmul.mubr.f32.gmra.mrb[0].mxu0 %v94
    %v237 = vpop.f32.mrb[0].mxu0
    %v238 = vadd.f32 %v51, %v237
    %v239 = vpop.f32.mrb[0].mxu0
    %240 = vmatprep.mubr.f32.mxu0 0.0
    %241 = vmatmul.mubr.f32.gmra.mrb[0].mxu0 %v97
    %v242 = vpop.f32.mrb[0].mxu0
    %v243 = vadd.f32 %v51, %v242
    %v244 = vpop.f32.mrb[0].mxu0
    %245 = vmatprep.mubr.f32.mxu0 0.0
    %246 = vmatmul.mubr.f32.gmra.mrb[0].mxu0 %v100
    %v247 = vpop.f32.mrb[0].mxu0
    %v248 = vadd.f32 %v51, %v247
    %v249 = vpop.f32.mrb[0].mxu0
    %250 = vdwg.mxu0
    %vm251 = vcmask 261120
    %252 = vst.msk [vmem:[#allocation2] sm:$0xff] %vm251, %v173
    %253 = vst.msk [vmem:[#allocation2 + $0x8] sm:$0xff] %vm251, %v178
    %254 = vst.msk [vmem:[#allocation2 + $0x10] sm:$0xff] %vm251, %v183
    %255 = vst.msk [vmem:[#allocation2 + $0x18] sm:$0xff] %vm251, %v188
    %256 = vst.msk [vmem:[#allocation2 + $0x20] sm:$0xff] %vm251, %v193
    %257 = vst.msk [vmem:[#allocation2 + $0x28] sm:$0xff] %vm251, %v198
    %258 = vst.msk [vmem:[#allocation2 + $0x30] sm:$0xff] %vm251, %v203
    %259 = vst.msk [vmem:[#allocation2 + $0x38] sm:$0xff] %vm251, %v208
    %260 = vst.msk [vmem:[#allocation2 + $0x40] sm:$0xff] %vm251, %v213
    %261 = vst.msk [vmem:[#allocation2 + $0x48] sm:$0xff] %vm251, %v218
    %262 = vst.msk [vmem:[#allocation2 + $0x50] sm:$0xff] %vm251, %v223
    %263 = vst.msk [vmem:[#allocation2 + $0x58] sm:$0xff] %vm251, %v228
    %264 = vst.msk [vmem:[#allocation2 + $0x60] sm:$0xff] %vm251, %v233
    %265 = vst.msk [vmem:[#allocation2 + $0x68] sm:$0xff] %vm251, %v238
    %266 = vst.msk [vmem:[#allocation2 + $0x70] sm:$0xff] %vm251, %v243
    %267 = vst.msk [vmem:[#allocation2 + $0x78] sm:$0xff] %vm251, %v248
    %v268 = vld [vmem:[%s1] sm:$0xff]
    %v269 = vld [vmem:[#allocation2] sm:$0xff]
    %v270 = vld [vmem:[%s3] sm:$0xff]
    %v271 = vld [vmem:[%s3 + $0x8] sm:$0xff]
    %v272 = vld [vmem:[%s3 + $0x10] sm:$0xff]
    %v273 = vld [vmem:[%s3 + $0x18] sm:$0xff]
    %v275 = vsel %vm251, %v268, 0
    %277 = vmatprep.subr.mxu0 0.0
    %278 = vmatpush1.msra.mxu0 %v270
    %279 = vmatprep.subr.mxu0 0.0
    %280 = vmatpush1.msra.mxu0 %v271
    %281 = vmatprep.subr.mxu0 0.0
    %282 = vmatpush1.msra.mxu0 %v272
    %283 = vmatprep.subr.mxu0 0.0
    %284 = vmatpush1.msra.mxu0 %v273
    %285 = vmatprep.subr.mxu0 0.0
    %286 = vmatpush1.msra.mxu0 0.0
    %287 = vmatprep.subr.mxu0 0.0
    %288 = vmatpush1.msra.mxu0 0.0
    %289 = vmatprep.subr.mxu0 0.0
    %290 = vmatpush1.msra.mxu0 0.0
    %291 = vmatprep.subr.mxu0 0.0
    %292 = vmatpush1.msra.mxu0 0.0
    %293 = vmatprep.subr.mxu0 0.0
    %294 = vmatpush1.msra.mxu0 0.0
    %295 = vmatprep.subr.mxu0 0.0
    %296 = vmatpush1.msra.mxu0 0.0
    %297 = vmatprep.subr.mxu0 0.0
    %298 = vmatpush1.msra.mxu0 0.0
    %299 = vmatprep.subr.mxu0 0.0
    %300 = vmatpush1.msra.mxu0 0.0
    %301 = vmatprep.subr.mxu0 0.0
    %302 = vmatpush1.msra.mxu0 0.0
    %303 = vmatprep.subr.mxu0 0.0
    %304 = vmatpush1.msra.mxu0 0.0
    %305 = vmatprep.subr.mxu0 0.0
    %306 = vmatpush1.msra.mxu0 0.0
    %307 = vmatprep.subr.mxu0 0.0
    %308 = vmatpush1.msra.mxu0 0.0
    %309 = vmatprep.subr.mxu0 0.0
    %310 = vmatpush1.msra.mxu0 0.0
    %311 = vmatprep.subr.mxu0 0.0
    %312 = vmatpush1.msra.mxu0 0.0
    %313 = vmatprep.subr.mxu0 0.0
    %314 = vmatpush1.msra.mxu0 0.0
    %315 = vmatprep.subr.mxu0 0.0
    %316 = vmatpush1.msra.mxu0 0.0
    %317 = vmatprep.subr.mxu0 0.0
    %318 = vmatpush1.msra.mxu0 0.0
    %319 = vmatprep.subr.mxu0 0.0
    %320 = vmatpush1.msra.mxu0 0.0
    %321 = vmatprep.subr.mxu0 0.0
    %322 = vmatpush1.msra.mxu0 0.0
    %323 = vmatprep.subr.mxu0 0.0
    %324 = vmatpush1.msra.mxu0 0.0
    %325 = vmatprep.subr.mxu0 0.0
    %326 = vmatpush1.msra.mxu0 0.0
    %327 = vmatprep.subr.mxu0 0.0
    %328 = vmatpush1.msra.mxu0 0.0
    %329 = vmatprep.subr.mxu0 0.0
    %330 = vmatpush1.msra.mxu0 0.0
    %331 = vmatprep.subr.mxu0 0.0
    %332 = vmatpush1.msra.mxu0 0.0
    %333 = vmatprep.subr.mxu0 0.0
    %334 = vmatpush1.msra.mxu0 0.0
    %335 = vmatprep.subr.mxu0 0.0
    %336 = vmatpush1.msra.mxu0 0.0
    %337 = vmatprep.subr.mxu0 0.0
    %338 = vmatpush1.msra.mxu0 0.0
    %339 = vmatprep.subr.mxu0 0.0
    %340 = vmatpush1.msra.mxu0 0.0
    %341 = vmatprep.mubr.f32.mxu0 0.0
    %342 = vmatmul.mubr.f32.gmra.mrb[0].mxu0 %v275
    %v343 = vpop.f32.mrb[0].mxu0
    %v344 = vadd.f32 0.0, %v343
    %v345 = vpop.f32.mrb[0].mxu0
    %346 = vdwg.mxu0
    %v347 = vadd.f32 %v269, %v344
    %v348 = vtanh.pop %v347
    %349 = vst.msk [vmem:[#allocation2] sm:$0xff] %vm251, %v348
    %s350 = scalar_lea.vmem [#allocation2], 8
    %v351 = vld [vmem:[%s350] sm:$0xff]
    %v352 = vld [vmem:[%s3] sm:$0xff]
    %v353 = vld [vmem:[%s3 + $0x8] sm:$0xff]
    %v354 = vld [vmem:[%s3 + $0x10] sm:$0xff]
    %v355 = vld [vmem:[%s3 + $0x18] sm:$0xff]
    %v357 = vsel %vm251, %v348, 0
    %359 = vmatprep.subr.mxu0 0.0
    %360 = vmatpush1.msra.mxu0 %v352
    %361 = vmatprep.subr.mxu0 0.0
    %362 = vmatpush1.msra.mxu0 %v353
    %363 = vmatprep.subr.mxu0 0.0
    %364 = vmatpush1.msra.mxu0 %v354
    %365 = vmatprep.subr.mxu0 0.0
    %366 = vmatpush1.msra.mxu0 %v355
    %367 = vmatprep.subr.mxu0 0.0
    %368 = vmatpush1.msra.mxu0 0.0
    %369 = vmatprep.subr.mxu0 0.0
    %370 = vmatpush1.msra.mxu0 0.0
    %371 = vmatprep.subr.mxu0 0.0
    %372 = vmatpush1.msra.mxu0 0.0
    %373 = vmatprep.subr.mxu0 0.0
    %374 = vmatpush1.msra.mxu0 0.0
    %375 = vmatprep.subr.mxu0 0.0
    %376 = vmatpush1.msra.mxu0 0.0
    %377 = vmatprep.subr.mxu0 0.0
    %378 = vmatpush1.msra.mxu0 0.0
    %379 = vmatprep.subr.mxu0 0.0
    %380 = vmatpush1.msra.mxu0 0.0
    %381 = vmatprep.subr.mxu0 0.0
    %382 = vmatpush1.msra.mxu0 0.0
    %383 = vmatprep.subr.mxu0 0.0
    %384 = vmatpush1.msra.mxu0 0.0
    %385 = vmatprep.subr.mxu0 0.0
    %386 = vmatpush1.msra.mxu0 0.0
    %387 = vmatprep.subr.mxu0 0.0
    %388 = vmatpush1.msra.mxu0 0.0
    %389 = vmatprep.subr.mxu0 0.0
    %390 = vmatpush1.msra.mxu0 0.0
    %391 = vmatprep.subr.mxu0 0.0
    %392 = vmatpush1.msra.mxu0 0.0
    %393 = vmatprep.subr.mxu0 0.0
    %394 = vmatpush1.msra.mxu0 0.0
    %395 = vmatprep.subr.mxu0 0.0
    %396 = vmatpush1.msra.mxu0 0.0
    %397 = vmatprep.subr.mxu0 0.0
    %398 = vmatpush1.msra.mxu0 0.0
    %399 = vmatprep.subr.mxu0 0.0
    %400 = vmatpush1.msra.mxu0 0.0
    %401 = vmatprep.subr.mxu0 0.0
    %402 = vmatpush1.msra.mxu0 0.0
    %403 = vmatprep.subr.mxu0 0.0
    %404 = vmatpush1.msra.mxu0 0.0
    %405 = vmatprep.subr.mxu0 0.0
    %406 = vmatpush1.msra.mxu0 0.0
    %407 = vmatprep.subr.mxu0 0.0
    %408 = vmatpush1.msra.mxu0 0.0
    %409 = vmatprep.subr.mxu0 0.0
    %410 = vmatpush1.msra.mxu0 0.0
    %411 = vmatprep.subr.mxu0 0.0
    %412 = vmatpush1.msra.mxu0 0.0
    %413 = vmatprep.subr.mxu0 0.0
    %414 = vmatpush1.msra.mxu0 0.0
    %415 = vmatprep.subr.mxu0 0.0
    %416 = vmatpush1.msra.mxu0 0.0
    %417 = vmatprep.subr.mxu0 0.0
    %418 = vmatpush1.msra.mxu0 0.0
    %419 = vmatprep.subr.mxu0 0.0
    %420 = vmatpush1.msra.mxu0 0.0
    %421 = vmatprep.subr.mxu0 0.0
    %422 = vmatpush1.msra.mxu0 0.0
    %423 = vmatprep.mubr.f32.mxu0 0.0
    %424 = vmatmul.mubr.f32.gmra.mrb[0].mxu0 %v357
    %v425 = vpop.f32.mrb[0].mxu0
    %v426 = vadd.f32 0.0, %v425
    %v427 = vpop.f32.mrb[0].mxu0
    %428 = vdwg.mxu0
    %v429 = vadd.f32 %v351, %v426
    %v430 = vtanh.pop %v429
    %431 = vst.msk [vmem:[%s350] sm:$0xff] %vm251, %v430
    %s432 = scalar_lea.vmem [#allocation2], 16
    %v433 = vld [vmem:[%s432] sm:$0xff]
    %v434 = vld [vmem:[%s3] sm:$0xff]
    %v435 = vld [vmem:[%s3 + $0x8] sm:$0xff]
    %v436 = vld [vmem:[%s3 + $0x10] sm:$0xff]
    %v437 = vld [vmem:[%s3 + $0x18] sm:$0xff]
    %v439 = vsel %vm251, %v430, 0
    %441 = vmatprep.subr.mxu0 0.0
    %442 = vmatpush1.msra.mxu0 %v434
    %443 = vmatprep.subr.mxu0 0.0
    %444 = vmatpush1.msra.mxu0 %v435
    %445 = vmatprep.subr.mxu0 0.0
    %446 = vmatpush1.msra.mxu0 %v436
    %447 = vmatprep.subr.mxu0 0.0
    %448 = vmatpush1.msra.mxu0 %v437
    %449 = vmatprep.subr.mxu0 0.0
    %450 = vmatpush1.msra.mxu0 0.0
    %451 = vmatprep.subr.mxu0 0.0
    %452 = vmatpush1.msra.mxu0 0.0
    %453 = vmatprep.subr.mxu0 0.0
    %454 = vmatpush1.msra.mxu0 0.0
    %455 = vmatprep.subr.mxu0 0.0
    %456 = vmatpush1.msra.mxu0 0.0
    %457 = vmatprep.subr.mxu0 0.0
    %458 = vmatpush1.msra.mxu0 0.0
    %459 = vmatprep.subr.mxu0 0.0
    %460 = vmatpush1.msra.mxu0 0.0
    %461 = vmatprep.subr.mxu0 0.0
    %462 = vmatpush1.msra.mxu0 0.0
    %463 = vmatprep.subr.mxu0 0.0
    %464 = vmatpush1.msra.mxu0 0.0
    %465 = vmatprep.subr.mxu0 0.0
    %466 = vmatpush1.msra.mxu0 0.0
    %467 = vmatprep.subr.mxu0 0.0
    %468 = vmatpush1.msra.mxu0 0.0
    %469 = vmatprep.subr.mxu0 0.0
    %470 = vmatpush1.msra.mxu0 0.0
    %471 = vmatprep.subr.mxu0 0.0
    %472 = vmatpush1.msra.mxu0 0.0
    %473 = vmatprep.subr.mxu0 0.0
    %474 = vmatpush1.msra.mxu0 0.0
    %475 = vmatprep.subr.mxu0 0.0
    %476 = vmatpush1.msra.mxu0 0.0
    %477 = vmatprep.subr.mxu0 0.0
    %478 = vmatpush1.msra.mxu0 0.0
    %479 = vmatprep.subr.mxu0 0.0
    %480 = vmatpush1.msra.mxu0 0.0
    %481 = vmatprep.subr.mxu0 0.0
    %482 = vmatpush1.msra.mxu0 0.0
    %483 = vmatprep.subr.mxu0 0.0
    %484 = vmatpush1.msra.mxu0 0.0
    %485 = vmatprep.subr.mxu0 0.0
    %486 = vmatpush1.msra.mxu0 0.0
    %487 = vmatprep.subr.mxu0 0.0
    %488 = vmatpush1.msra.mxu0 0.0
    %489 = vmatprep.subr.mxu0 0.0
    %490 = vmatpush1.msra.mxu0 0.0
    %491 = vmatprep.subr.mxu0 0.0
    %492 = vmatpush1.msra.mxu0 0.0
    %493 = vmatprep.subr.mxu0 0.0
    %494 = vmatpush1.msra.mxu0 0.0
    %495 = vmatprep.subr.mxu0 0.0
    %496 = vmatpush1.msra.mxu0 0.0
    %497 = vmatprep.subr.mxu0 0.0
    %498 = vmatpush1.msra.mxu0 0.0
    %499 = vmatprep.subr.mxu0 0.0
    %500 = vmatpush1.msra.mxu0 0.0
    %501 = vmatprep.subr.mxu0 0.0
    %502 = vmatpush1.msra.mxu0 0.0
    %503 = vmatprep.subr.mxu0 0.0
    %504 = vmatpush1.msra.mxu0 0.0
    %505 = vmatprep.mubr.f32.mxu0 0.0
    %506 = vmatmul.mubr.f32.gmra.mrb[0].mxu0 %v439
    %v507 = vpop.f32.mrb[0].mxu0
    %v508 = vadd.f32 0.0, %v507
    %v509 = vpop.f32.mrb[0].mxu0
    %510 = vdwg.mxu0
    %v511 = vadd.f32 %v433, %v508
    %v512 = vtanh.pop %v511
    %513 = vst.msk [vmem:[%s432] sm:$0xff] %vm251, %v512
    %s514 = scalar_lea.vmem [#allocation2], 24
    %v515 = vld [vmem:[%s514] sm:$0xff]
    %v516 = vld [vmem:[%s3] sm:$0xff]
    %v517 = vld [vmem:[%s3 + $0x8] sm:$0xff]
    %v518 = vld [vmem:[%s3 + $0x10] sm:$0xff]
    %v519 = vld [vmem:[%s3 + $0x18] sm:$0xff]
    %v521 = vsel %vm251, %v512, 0
    %523 = vmatprep.subr.mxu0 0.0
    %524 = vmatpush1.msra.mxu0 %v516
    %525 = vmatprep.subr.mxu0 0.0
    %526 = vmatpush1.msra.mxu0 %v517
    %527 = vmatprep.subr.mxu0 0.0
    %528 = vmatpush1.msra.mxu0 %v518
    %529 = vmatprep.subr.mxu0 0.0
    %530 = vmatpush1.msra.mxu0 %v519
    %531 = vmatprep.subr.mxu0 0.0
    %532 = vmatpush1.msra.mxu0 0.0
    %533 = vmatprep.subr.mxu0 0.0
    %534 = vmatpush1.msra.mxu0 0.0
    %535 = vmatprep.subr.mxu0 0.0
    %536 = vmatpush1.msra.mxu0 0.0
    %537 = vmatprep.subr.mxu0 0.0
    %538 = vmatpush1.msra.mxu0 0.0
    %539 = vmatprep.subr.mxu0 0.0
    %540 = vmatpush1.msra.mxu0 0.0
    %541 = vmatprep.subr.mxu0 0.0
    %542 = vmatpush1.msra.mxu0 0.0
    %543 = vmatprep.subr.mxu0 0.0
    %544 = vmatpush1.msra.mxu0 0.0
    %545 = vmatprep.subr.mxu0 0.0
    %546 = vmatpush1.msra.mxu0 0.0
    %547 = vmatprep.subr.mxu0 0.0
    %548 = vmatpush1.msra.mxu0 0.0
    %549 = vmatprep.subr.mxu0 0.0
    %550 = vmatpush1.msra.mxu0 0.0
    %551 = vmatprep.subr.mxu0 0.0
    %552 = vmatpush1.msra.mxu0 0.0
    %553 = vmatprep.subr.mxu0 0.0
    %554 = vmatpush1.msra.mxu0 0.0
    %555 = vmatprep.subr.mxu0 0.0
    %556 = vmatpush1.msra.mxu0 0.0
    %557 = vmatprep.subr.mxu0 0.0
    %558 = vmatpush1.msra.mxu0 0.0
    %559 = vmatprep.subr.mxu0 0.0
    %560 = vmatpush1.msra.mxu0 0.0
    %561 = vmatprep.subr.mxu0 0.0
    %562 = vmatpush1.msra.mxu0 0.0
    %563 = vmatprep.subr.mxu0 0.0
    %564 = vmatpush1.msra.mxu0 0.0
    %565 = vmatprep.subr.mxu0 0.0
    %566 = vmatpush1.msra.mxu0 0.0
    %567 = vmatprep.subr.mxu0 0.0
    %568 = vmatpush1.msra.mxu0 0.0
    %569 = vmatprep.subr.mxu0 0.0
    %570 = vmatpush1.msra.mxu0 0.0
    %571 = vmatprep.subr.mxu0 0.0
    %572 = vmatpush1.msra.mxu0 0.0
    %573 = vmatprep.subr.mxu0 0.0
    %574 = vmatpush1.msra.mxu0 0.0
    %575 = vmatprep.subr.mxu0 0.0
    %576 = vmatpush1.msra.mxu0 0.0
    %577 = vmatprep.subr.mxu0 0.0
    %578 = vmatpush1.msra.mxu0 0.0
    %579 = vmatprep.subr.mxu0 0.0
    %580 = vmatpush1.msra.mxu0 0.0
    %581 = vmatprep.subr.mxu0 0.0
    %582 = vmatpush1.msra.mxu0 0.0
    %583 = vmatprep.subr.mxu0 0.0
    %584 = vmatpush1.msra.mxu0 0.0
    %585 = vmatprep.subr.mxu0 0.0
    %586 = vmatpush1.msra.mxu0 0.0
    %587 = vmatprep.mubr.f32.mxu0 0.0
    %588 = vmatmul.mubr.f32.gmra.mrb[0].mxu0 %v521
    %v589 = vpop.f32.mrb[0].mxu0
    %v590 = vadd.f32 0.0, %v589
    %v591 = vpop.f32.mrb[0].mxu0
    %592 = vdwg.mxu0
    %v593 = vadd.f32 %v515, %v590
    %v594 = vtanh.pop %v593
    %595 = vst.msk [vmem:[%s514] sm:$0xff] %vm251, %v594
    %s596 = scalar_lea.vmem [#allocation2], 32
    %v597 = vld [vmem:[%s596] sm:$0xff]
    %v598 = vld [vmem:[%s3] sm:$0xff]
    %v599 = vld [vmem:[%s3 + $0x8] sm:$0xff]
    %v600 = vld [vmem:[%s3 + $0x10] sm:$0xff]
    %v601 = vld [vmem:[%s3 + $0x18] sm:$0xff]
    %v603 = vsel %vm251, %v594, 0
    %605 = vmatprep.subr.mxu0 0.0
    %606 = vmatpush1.msra.mxu0 %v598
    %607 = vmatprep.subr.mxu0 0.0
    %608 = vmatpush1.msra.mxu0 %v599
    %609 = vmatprep.subr.mxu0 0.0
    %610 = vmatpush1.msra.mxu0 %v600
    %611 = vmatprep.subr.mxu0 0.0
    %612 = vmatpush1.msra.mxu0 %v601
    %613 = vmatprep.subr.mxu0 0.0
    %614 = vmatpush1.msra.mxu0 0.0
    %615 = vmatprep.subr.mxu0 0.0
    %616 = vmatpush1.msra.mxu0 0.0
    %617 = vmatprep.subr.mxu0 0.0
    %618 = vmatpush1.msra.mxu0 0.0
    %619 = vmatprep.subr.mxu0 0.0
    %620 = vmatpush1.msra.mxu0 0.0
    %621 = vmatprep.subr.mxu0 0.0
    %622 = vmatpush1.msra.mxu0 0.0
    %623 = vmatprep.subr.mxu0 0.0
    %624 = vmatpush1.msra.mxu0 0.0
    %625 = vmatprep.subr.mxu0 0.0
    %626 = vmatpush1.msra.mxu0 0.0
    %627 = vmatprep.subr.mxu0 0.0
    %628 = vmatpush1.msra.mxu0 0.0
    %629 = vmatprep.subr.mxu0 0.0
    %630 = vmatpush1.msra.mxu0 0.0
    %631 = vmatprep.subr.mxu0 0.0
    %632 = vmatpush1.msra.mxu0 0.0
    %633 = vmatprep.subr.mxu0 0.0
    %634 = vmatpush1.msra.mxu0 0.0
    %635 = vmatprep.subr.mxu0 0.0
    %636 = vmatpush1.msra.mxu0 0.0
    %637 = vmatprep.subr.mxu0 0.0
    %638 = vmatpush1.msra.mxu0 0.0
    %639 = vmatprep.subr.mxu0 0.0
    %640 = vmatpush1.msra.mxu0 0.0
    %641 = vmatprep.subr.mxu0 0.0
    %642 = vmatpush1.msra.mxu0 0.0
    %643 = vmatprep.subr.mxu0 0.0
    %644 = vmatpush1.msra.mxu0 0.0
    %645 = vmatprep.subr.mxu0 0.0
    %646 = vmatpush1.msra.mxu0 0.0
    %647 = vmatprep.subr.mxu0 0.0
    %648 = vmatpush1.msra.mxu0 0.0
    %649 = vmatprep.subr.mxu0 0.0
    %650 = vmatpush1.msra.mxu0 0.0
    %651 = vmatprep.subr.mxu0 0.0
    %652 = vmatpush1.msra.mxu0 0.0
    %653 = vmatprep.subr.mxu0 0.0
    %654 = vmatpush1.msra.mxu0 0.0
    %655 = vmatprep.subr.mxu0 0.0
    %656 = vmatpush1.msra.mxu0 0.0
    %657 = vmatprep.subr.mxu0 0.0
    %658 = vmatpush1.msra.mxu0 0.0
    %659 = vmatprep.subr.mxu0 0.0
    %660 = vmatpush1.msra.mxu0 0.0
    %661 = vmatprep.subr.mxu0 0.0
    %662 = vmatpush1.msra.mxu0 0.0
    %663 = vmatprep.subr.mxu0 0.0
    %664 = vmatpush1.msra.mxu0 0.0
    %665 = vmatprep.subr.mxu0 0.0
    %666 = vmatpush1.msra.mxu0 0.0
    %667 = vmatprep.subr.mxu0 0.0
    %668 = vmatpush1.msra.mxu0 0.0
    %669 = vmatprep.mubr.f32.mxu0 0.0
    %670 = vmatmul.mubr.f32.gmra.mrb[0].mxu0 %v603
    %v671 = vpop.f32.mrb[0].mxu0
    %v672 = vadd.f32 0.0, %v671
    %v673 = vpop.f32.mrb[0].mxu0
    %674 = vdwg.mxu0
    %v675 = vadd.f32 %v597, %v672
    %v676 = vtanh.pop %v675
    %677 = vst.msk [vmem:[%s596] sm:$0xff] %vm251, %v676
    %s678 = scalar_lea.vmem [#allocation2], 40
    %v679 = vld [vmem:[%s678] sm:$0xff]
    %v680 = vld [vmem:[%s3] sm:$0xff]
    %v681 = vld [vmem:[%s3 + $0x8] sm:$0xff]
    %v682 = vld [vmem:[%s3 + $0x10] sm:$0xff]
    %v683 = vld [vmem:[%s3 + $0x18] sm:$0xff]
    %v685 = vsel %vm251, %v676, 0
    %687 = vmatprep.subr.mxu0 0.0
    %688 = vmatpush1.msra.mxu0 %v680
    %689 = vmatprep.subr.mxu0 0.0
    %690 = vmatpush1.msra.mxu0 %v681
    %691 = vmatprep.subr.mxu0 0.0
    %692 = vmatpush1.msra.mxu0 %v682
    %693 = vmatprep.subr.mxu0 0.0
    %694 = vmatpush1.msra.mxu0 %v683
    %695 = vmatprep.subr.mxu0 0.0
    %696 = vmatpush1.msra.mxu0 0.0
    %697 = vmatprep.subr.mxu0 0.0
    %698 = vmatpush1.msra.mxu0 0.0
    %699 = vmatprep.subr.mxu0 0.0
    %700 = vmatpush1.msra.mxu0 0.0
    %701 = vmatprep.subr.mxu0 0.0
    %702 = vmatpush1.msra.mxu0 0.0
    %703 = vmatprep.subr.mxu0 0.0
    %704 = vmatpush1.msra.mxu0 0.0
    %705 = vmatprep.subr.mxu0 0.0
    %706 = vmatpush1.msra.mxu0 0.0
    %707 = vmatprep.subr.mxu0 0.0
    %708 = vmatpush1.msra.mxu0 0.0
    %709 = vmatprep.subr.mxu0 0.0
    %710 = vmatpush1.msra.mxu0 0.0
    %711 = vmatprep.subr.mxu0 0.0
    %712 = vmatpush1.msra.mxu0 0.0
    %713 = vmatprep.subr.mxu0 0.0
    %714 = vmatpush1.msra.mxu0 0.0
    %715 = vmatprep.subr.mxu0 0.0
    %716 = vmatpush1.msra.mxu0 0.0
    %717 = vmatprep.subr.mxu0 0.0
    %718 = vmatpush1.msra.mxu0 0.0
    %719 = vmatprep.subr.mxu0 0.0
    %720 = vmatpush1.msra.mxu0 0.0
    %721 = vmatprep.subr.mxu0 0.0
    %722 = vmatpush1.msra.mxu0 0.0
    %723 = vmatprep.subr.mxu0 0.0
    %724 = vmatpush1.msra.mxu0 0.0
    %725 = vmatprep.subr.mxu0 0.0
    %726 = vmatpush1.msra.mxu0 0.0
    %727 = vmatprep.subr.mxu0 0.0
    %728 = vmatpush1.msra.mxu0 0.0
    %729 = vmatprep.subr.mxu0 0.0
    %730 = vmatpush1.msra.mxu0 0.0
    %731 = vmatprep.subr.mxu0 0.0
    %732 = vmatpush1.msra.mxu0 0.0
    %733 = vmatprep.subr.mxu0 0.0
    %734 = vmatpush1.msra.mxu0 0.0
    %735 = vmatprep.subr.mxu0 0.0
    %736 = vmatpush1.msra.mxu0 0.0
    %737 = vmatprep.subr.mxu0 0.0
    %738 = vmatpush1.msra.mxu0 0.0
    %739 = vmatprep.subr.mxu0 0.0
    %740 = vmatpush1.msra.mxu0 0.0
    %741 = vmatprep.subr.mxu0 0.0
    %742 = vmatpush1.msra.mxu0 0.0
    %743 = vmatprep.subr.mxu0 0.0
    %744 = vmatpush1.msra.mxu0 0.0
    %745 = vmatprep.subr.mxu0 0.0
    %746 = vmatpush1.msra.mxu0 0.0
    %747 = vmatprep.subr.mxu0 0.0
    %748 = vmatpush1.msra.mxu0 0.0
    %749 = vmatprep.subr.mxu0 0.0
    %750 = vmatpush1.msra.mxu0 0.0
    %751 = vmatprep.mubr.f32.mxu0 0.0
    %752 = vmatmul.mubr.f32.gmra.mrb[0].mxu0 %v685
    %v753 = vpop.f32.mrb[0].mxu0
    %v754 = vadd.f32 0.0, %v753
    %v755 = vpop.f32.mrb[0].mxu0
    %756 = vdwg.mxu0
    %v757 = vadd.f32 %v679, %v754
    %v758 = vtanh.pop %v757
    %759 = vst.msk [vmem:[%s678] sm:$0xff] %vm251, %v758
    %s760 = scalar_lea.vmem [#allocation2], 48
    %v761 = vld [vmem:[%s760] sm:$0xff]
    %v762 = vld [vmem:[%s3] sm:$0xff]
    %v763 = vld [vmem:[%s3 + $0x8] sm:$0xff]
    %v764 = vld [vmem:[%s3 + $0x10] sm:$0xff]
    %v765 = vld [vmem:[%s3 + $0x18] sm:$0xff]
    %v767 = vsel %vm251, %v758, 0
    %769 = vmatprep.subr.mxu0 0.0
    %770 = vmatpush1.msra.mxu0 %v762
    %771 = vmatprep.subr.mxu0 0.0
    %772 = vmatpush1.msra.mxu0 %v763
    %773 = vmatprep.subr.mxu0 0.0
    %774 = vmatpush1.msra.mxu0 %v764
    %775 = vmatprep.subr.mxu0 0.0
    %776 = vmatpush1.msra.mxu0 %v765
    %777 = vmatprep.subr.mxu0 0.0
    %778 = vmatpush1.msra.mxu0 0.0
    %779 = vmatprep.subr.mxu0 0.0
    %780 = vmatpush1.msra.mxu0 0.0
    %781 = vmatprep.subr.mxu0 0.0
    %782 = vmatpush1.msra.mxu0 0.0
    %783 = vmatprep.subr.mxu0 0.0
    %784 = vmatpush1.msra.mxu0 0.0
    %785 = vmatprep.subr.mxu0 0.0
    %786 = vmatpush1.msra.mxu0 0.0
    %787 = vmatprep.subr.mxu0 0.0
    %788 = vmatpush1.msra.mxu0 0.0
    %789 = vmatprep.subr.mxu0 0.0
    %790 = vmatpush1.msra.mxu0 0.0
    %791 = vmatprep.subr.mxu0 0.0
    %792 = vmatpush1.msra.mxu0 0.0
    %793 = vmatprep.subr.mxu0 0.0
    %794 = vmatpush1.msra.mxu0 0.0
    %795 = vmatprep.subr.mxu0 0.0
    %796 = vmatpush1.msra.mxu0 0.0
    %797 = vmatprep.subr.mxu0 0.0
    %798 = vmatpush1.msra.mxu0 0.0
    %799 = vmatprep.subr.mxu0 0.0
    %800 = vmatpush1.msra.mxu0 0.0
    %801 = vmatprep.subr.mxu0 0.0
    %802 = vmatpush1.msra.mxu0 0.0
    %803 = vmatprep.subr.mxu0 0.0
    %804 = vmatpush1.msra.mxu0 0.0
    %805 = vmatprep.subr.mxu0 0.0
    %806 = vmatpush1.msra.mxu0 0.0
    %807 = vmatprep.subr.mxu0 0.0
    %808 = vmatpush1.msra.mxu0 0.0
    %809 = vmatprep.subr.mxu0 0.0
    %810 = vmatpush1.msra.mxu0 0.0
    %811 = vmatprep.subr.mxu0 0.0
    %812 = vmatpush1.msra.mxu0 0.0
    %813 = vmatprep.subr.mxu0 0.0
    %814 = vmatpush1.msra.mxu0 0.0
    %815 = vmatprep.subr.mxu0 0.0
    %816 = vmatpush1.msra.mxu0 0.0
    %817 = vmatprep.subr.mxu0 0.0
    %818 = vmatpush1.msra.mxu0 0.0
    %819 = vmatprep.subr.mxu0 0.0
    %820 = vmatpush1.msra.mxu0 0.0
    %821 = vmatprep.subr.mxu0 0.0
    %822 = vmatpush1.msra.mxu0 0.0
    %823 = vmatprep.subr.mxu0 0.0
    %824 = vmatpush1.msra.mxu0 0.0
    %825 = vmatprep.subr.mxu0 0.0
    %826 = vmatpush1.msra.mxu0 0.0
    %827 = vmatprep.subr.mxu0 0.0
    %828 = vmatpush1.msra.mxu0 0.0
    %829 = vmatprep.subr.mxu0 0.0
    %830 = vmatpush1.msra.mxu0 0.0
    %831 = vmatprep.subr.mxu0 0.0
    %832 = vmatpush1.msra.mxu0 0.0
    %833 = vmatprep.mubr.f32.mxu0 0.0
    %834 = vmatmul.mubr.f32.gmra.mrb[0].mxu0 %v767
    %v835 = vpop.f32.mrb[0].mxu0
    %v836 = vadd.f32 0.0, %v835
    %v837 = vpop.f32.mrb[0].mxu0
    %838 = vdwg.mxu0
    %v839 = vadd.f32 %v761, %v836
    %v840 = vtanh.pop %v839
    %841 = vst.msk [vmem:[%s760] sm:$0xff] %vm251, %v840
    %s842 = scalar_lea.vmem [#allocation2], 56
    %v843 = vld [vmem:[%s842] sm:$0xff]
    %v844 = vld [vmem:[%s3] sm:$0xff]
    %v845 = vld [vmem:[%s3 + $0x8] sm:$0xff]
    %v846 = vld [vmem:[%s3 + $0x10] sm:$0xff]
    %v847 = vld [vmem:[%s3 + $0x18] sm:$0xff]
    %v849 = vsel %vm251, %v840, 0
    %851 = vmatprep.subr.mxu0 0.0
    %852 = vmatpush1.msra.mxu0 %v844
    %853 = vmatprep.subr.mxu0 0.0
    %854 = vmatpush1.msra.mxu0 %v845
    %855 = vmatprep.subr.mxu0 0.0
    %856 = vmatpush1.msra.mxu0 %v846
    %857 = vmatprep.subr.mxu0 0.0
    %858 = vmatpush1.msra.mxu0 %v847
    %859 = vmatprep.subr.mxu0 0.0
    %860 = vmatpush1.msra.mxu0 0.0
    %861 = vmatprep.subr.mxu0 0.0
    %862 = vmatpush1.msra.mxu0 0.0
    %863 = vmatprep.subr.mxu0 0.0
    %864 = vmatpush1.msra.mxu0 0.0
    %865 = vmatprep.subr.mxu0 0.0
    %866 = vmatpush1.msra.mxu0 0.0
    %867 = vmatprep.subr.mxu0 0.0
    %868 = vmatpush1.msra.mxu0 0.0
    %869 = vmatprep.subr.mxu0 0.0
    %870 = vmatpush1.msra.mxu0 0.0
    %871 = vmatprep.subr.mxu0 0.0
    %872 = vmatpush1.msra.mxu0 0.0
    %873 = vmatprep.subr.mxu0 0.0
    %874 = vmatpush1.msra.mxu0 0.0
    %875 = vmatprep.subr.mxu0 0.0
    %876 = vmatpush1.msra.mxu0 0.0
    %877 = vmatprep.subr.mxu0 0.0
    %878 = vmatpush1.msra.mxu0 0.0
    %879 = vmatprep.subr.mxu0 0.0
    %880 = vmatpush1.msra.mxu0 0.0
    %881 = vmatprep.subr.mxu0 0.0
    %882 = vmatpush1.msra.mxu0 0.0
    %883 = vmatprep.subr.mxu0 0.0
    %884 = vmatpush1.msra.mxu0 0.0
    %885 = vmatprep.subr.mxu0 0.0
    %886 = vmatpush1.msra.mxu0 0.0
    %887 = vmatprep.subr.mxu0 0.0
    %888 = vmatpush1.msra.mxu0 0.0
    %889 = vmatprep.subr.mxu0 0.0
    %890 = vmatpush1.msra.mxu0 0.0
    %891 = vmatprep.subr.mxu0 0.0
    %892 = vmatpush1.msra.mxu0 0.0
    %893 = vmatprep.subr.mxu0 0.0
    %894 = vmatpush1.msra.mxu0 0.0
    %895 = vmatprep.subr.mxu0 0.0
    %896 = vmatpush1.msra.mxu0 0.0
    %897 = vmatprep.subr.mxu0 0.0
    %898 = vmatpush1.msra.mxu0 0.0
    %899 = vmatprep.subr.mxu0 0.0
    %900 = vmatpush1.msra.mxu0 0.0
    %901 = vmatprep.subr.mxu0 0.0
    %902 = vmatpush1.msra.mxu0 0.0
    %903 = vmatprep.subr.mxu0 0.0
    %904 = vmatpush1.msra.mxu0 0.0
    %905 = vmatprep.subr.mxu0 0.0
    %906 = vmatpush1.msra.mxu0 0.0
    %907 = vmatprep.subr.mxu0 0.0
    %908 = vmatpush1.msra.mxu0 0.0
    %909 = vmatprep.subr.mxu0 0.0
    %910 = vmatpush1.msra.mxu0 0.0
    %911 = vmatprep.subr.mxu0 0.0
    %912 = vmatpush1.msra.mxu0 0.0
    %913 = vmatprep.subr.mxu0 0.0
    %914 = vmatpush1.msra.mxu0 0.0
    %915 = vmatprep.mubr.f32.mxu0 0.0
    %916 = vmatmul.mubr.f32.gmra.mrb[0].mxu0 %v849
    %v917 = vpop.f32.mrb[0].mxu0
    %v918 = vadd.f32 0.0, %v917
    %v919 = vpop.f32.mrb[0].mxu0
    %920 = vdwg.mxu0
    %v921 = vadd.f32 %v843, %v918
    %v922 = vtanh.pop %v921
    %923 = vst.msk [vmem:[%s842] sm:$0xff] %vm251, %v922
    %s924 = scalar_lea.vmem [#allocation2], 64
    %v925 = vld [vmem:[%s924] sm:$0xff]
    %v926 = vld [vmem:[%s3] sm:$0xff]
    %v927 = vld [vmem:[%s3 + $0x8] sm:$0xff]
    %v928 = vld [vmem:[%s3 + $0x10] sm:$0xff]
    %v929 = vld [vmem:[%s3 + $0x18] sm:$0xff]
    %v931 = vsel %vm251, %v922, 0
    %933 = vmatprep.subr.mxu0 0.0
    %934 = vmatpush1.msra.mxu0 %v926
    %935 = vmatprep.subr.mxu0 0.0
    %936 = vmatpush1.msra.mxu0 %v927
    %937 = vmatprep.subr.mxu0 0.0
    %938 = vmatpush1.msra.mxu0 %v928
    %939 = vmatprep.subr.mxu0 0.0
    %940 = vmatpush1.msra.mxu0 %v929
    %941 = vmatprep.subr.mxu0 0.0
    %942 = vmatpush1.msra.mxu0 0.0
    %943 = vmatprep.subr.mxu0 0.0
    %944 = vmatpush1.msra.mxu0 0.0
    %945 = vmatprep.subr.mxu0 0.0
    %946 = vmatpush1.msra.mxu0 0.0
    %947 = vmatprep.subr.mxu0 0.0
    %948 = vmatpush1.msra.mxu0 0.0
    %949 = vmatprep.subr.mxu0 0.0
    %950 = vmatpush1.msra.mxu0 0.0
    %951 = vmatprep.subr.mxu0 0.0
    %952 = vmatpush1.msra.mxu0 0.0
    %953 = vmatprep.subr.mxu0 0.0
    %954 = vmatpush1.msra.mxu0 0.0
    %955 = vmatprep.subr.mxu0 0.0
    %956 = vmatpush1.msra.mxu0 0.0
    %957 = vmatprep.subr.mxu0 0.0
    %958 = vmatpush1.msra.mxu0 0.0
    %959 = vmatprep.subr.mxu0 0.0
    %960 = vmatpush1.msra.mxu0 0.0
    %961 = vmatprep.subr.mxu0 0.0
    %962 = vmatpush1.msra.mxu0 0.0
    %963 = vmatprep.subr.mxu0 0.0
    %964 = vmatpush1.msra.mxu0 0.0
    %965 = vmatprep.subr.mxu0 0.0
    %966 = vmatpush1.msra.mxu0 0.0
    %967 = vmatprep.subr.mxu0 0.0
    %968 = vmatpush1.msra.mxu0 0.0
    %969 = vmatprep.subr.mxu0 0.0
    %970 = vmatpush1.msra.mxu0 0.0
    %971 = vmatprep.subr.mxu0 0.0
    %972 = vmatpush1.msra.mxu0 0.0
    %973 = vmatprep.subr.mxu0 0.0
    %974 = vmatpush1.msra.mxu0 0.0
    %975 = vmatprep.subr.mxu0 0.0
    %976 = vmatpush1.msra.mxu0 0.0
    %977 = vmatprep.subr.mxu0 0.0
    %978 = vmatpush1.msra.mxu0 0.0
    %979 = vmatprep.subr.mxu0 0.0
    %980 = vmatpush1.msra.mxu0 0.0
    %981 = vmatprep.subr.mxu0 0.0
    %982 = vmatpush1.msra.mxu0 0.0
    %983 = vmatprep.subr.mxu0 0.0
    %984 = vmatpush1.msra.mxu0 0.0
    %985 = vmatprep.subr.mxu0 0.0
    %986 = vmatpush1.msra.mxu0 0.0
    %987 = vmatprep.subr.mxu0 0.0
    %988 = vmatpush1.msra.mxu0 0.0
    %989 = vmatprep.subr.mxu0 0.0
    %990 = vmatpush1.msra.mxu0 0.0
    %991 = vmatprep.subr.mxu0 0.0
    %992 = vmatpush1.msra.mxu0 0.0
    %993 = vmatprep.subr.mxu0 0.0
    %994 = vmatpush1.msra.mxu0 0.0
    %995 = vmatprep.subr.mxu0 0.0
    %996 = vmatpush1.msra.mxu0 0.0
    %997 = vmatprep.mubr.f32.mxu0 0.0
    %998 = vmatmul.mubr.f32.gmra.mrb[0].mxu0 %v931
    %v999 = vpop.f32.mrb[0].mxu0
    %v1000 = vadd.f32 0.0, %v999
    %v1001 = vpop.f32.mrb[0].mxu0
    %1002 = vdwg.mxu0
    %v1003 = vadd.f32 %v925, %v1000
    %v1004 = vtanh.pop %v1003
    %1005 = vst.msk [vmem:[%s924] sm:$0xff] %vm251, %v1004
    %s1006 = scalar_lea.vmem [#allocation2], 72
    %v1007 = vld [vmem:[%s1006] sm:$0xff]
    %v1008 = vld [vmem:[%s3] sm:$0xff]
    %v1009 = vld [vmem:[%s3 + $0x8] sm:$0xff]
    %v1010 = vld [vmem:[%s3 + $0x10] sm:$0xff]
    %v1011 = vld [vmem:[%s3 + $0x18] sm:$0xff]
    %v1013 = vsel %vm251, %v1004, 0
    %1015 = vmatprep.subr.mxu0 0.0
    %1016 = vmatpush1.msra.mxu0 %v1008
    %1017 = vmatprep.subr.mxu0 0.0
    %1018 = vmatpush1.msra.mxu0 %v1009
    %1019 = vmatprep.subr.mxu0 0.0
    %1020 = vmatpush1.msra.mxu0 %v1010
    %1021 = vmatprep.subr.mxu0 0.0
    %1022 = vmatpush1.msra.mxu0 %v1011
    %1023 = vmatprep.subr.mxu0 0.0
    %1024 = vmatpush1.msra.mxu0 0.0
    %1025 = vmatprep.subr.mxu0 0.0
    %1026 = vmatpush1.msra.mxu0 0.0
    %1027 = vmatprep.subr.mxu0 0.0
    %1028 = vmatpush1.msra.mxu0 0.0
    %1029 = vmatprep.subr.mxu0 0.0
    %1030 = vmatpush1.msra.mxu0 0.0
    %1031 = vmatprep.subr.mxu0 0.0
    %1032 = vmatpush1.msra.mxu0 0.0
    %1033 = vmatprep.subr.mxu0 0.0
    %1034 = vmatpush1.msra.mxu0 0.0
    %1035 = vmatprep.subr.mxu0 0.0
    %1036 = vmatpush1.msra.mxu0 0.0
    %1037 = vmatprep.subr.mxu0 0.0
    %1038 = vmatpush1.msra.mxu0 0.0
    %1039 = vmatprep.subr.mxu0 0.0
    %1040 = vmatpush1.msra.mxu0 0.0
    %1041 = vmatprep.subr.mxu0 0.0
    %1042 = vmatpush1.msra.mxu0 0.0
    %1043 = vmatprep.subr.mxu0 0.0
    %1044 = vmatpush1.msra.mxu0 0.0
    %1045 = vmatprep.subr.mxu0 0.0
    %1046 = vmatpush1.msra.mxu0 0.0
    %1047 = vmatprep.subr.mxu0 0.0
    %1048 = vmatpush1.msra.mxu0 0.0
    %1049 = vmatprep.subr.mxu0 0.0
    %1050 = vmatpush1.msra.mxu0 0.0
    %1051 = vmatprep.subr.mxu0 0.0
    %1052 = vmatpush1.msra.mxu0 0.0
    %1053 = vmatprep.subr.mxu0 0.0
    %1054 = vmatpush1.msra.mxu0 0.0
    %1055 = vmatprep.subr.mxu0 0.0
    %1056 = vmatpush1.msra.mxu0 0.0
    %1057 = vmatprep.subr.mxu0 0.0
    %1058 = vmatpush1.msra.mxu0 0.0
    %1059 = vmatprep.subr.mxu0 0.0
    %1060 = vmatpush1.msra.mxu0 0.0
    %1061 = vmatprep.subr.mxu0 0.0
    %1062 = vmatpush1.msra.mxu0 0.0
    %1063 = vmatprep.subr.mxu0 0.0
    %1064 = vmatpush1.msra.mxu0 0.0
    %1065 = vmatprep.subr.mxu0 0.0
    %1066 = vmatpush1.msra.mxu0 0.0
    %1067 = vmatprep.subr.mxu0 0.0
    %1068 = vmatpush1.msra.mxu0 0.0
    %1069 = vmatprep.subr.mxu0 0.0
    %1070 = vmatpush1.msra.mxu0 0.0
    %1071 = vmatprep.subr.mxu0 0.0
    %1072 = vmatpush1.msra.mxu0 0.0
    %1073 = vmatprep.subr.mxu0 0.0
    %1074 = vmatpush1.msra.mxu0 0.0
    %1075 = vmatprep.subr.mxu0 0.0
    %1076 = vmatpush1.msra.mxu0 0.0
    %1077 = vmatprep.subr.mxu0 0.0
    %1078 = vmatpush1.msra.mxu0 0.0
    %1079 = vmatprep.mubr.f32.mxu0 0.0
    %1080 = vmatmul.mubr.f32.gmra.mrb[0].mxu0 %v1013
    %v1081 = vpop.f32.mrb[0].mxu0
    %v1082 = vadd.f32 0.0, %v1081
    %v1083 = vpop.f32.mrb[0].mxu0
    %1084 = vdwg.mxu0
    %v1085 = vadd.f32 %v1007, %v1082
    %v1086 = vtanh.pop %v1085
    %1087 = vst.msk [vmem:[%s1006] sm:$0xff] %vm251, %v1086
    %s1088 = scalar_lea.vmem [#allocation2], 80
    %v1089 = vld [vmem:[%s1088] sm:$0xff]
    %v1090 = vld [vmem:[%s3] sm:$0xff]
    %v1091 = vld [vmem:[%s3 + $0x8] sm:$0xff]
    %v1092 = vld [vmem:[%s3 + $0x10] sm:$0xff]
    %v1093 = vld [vmem:[%s3 + $0x18] sm:$0xff]
    %v1095 = vsel %vm251, %v1086, 0
    %1097 = vmatprep.subr.mxu0 0.0
    %1098 = vmatpush1.msra.mxu0 %v1090
    %1099 = vmatprep.subr.mxu0 0.0
    %1100 = vmatpush1.msra.mxu0 %v1091
    %1101 = vmatprep.subr.mxu0 0.0
    %1102 = vmatpush1.msra.mxu0 %v1092
    %1103 = vmatprep.subr.mxu0 0.0
    %1104 = vmatpush1.msra.mxu0 %v1093
    %1105 = vmatprep.subr.mxu0 0.0
    %1106 = vmatpush1.msra.mxu0 0.0
    %1107 = vmatprep.subr.mxu0 0.0
    %1108 = vmatpush1.msra.mxu0 0.0
    %1109 = vmatprep.subr.mxu0 0.0
    %1110 = vmatpush1.msra.mxu0 0.0
    %1111 = vmatprep.subr.mxu0 0.0
    %1112 = vmatpush1.msra.mxu0 0.0
    %1113 = vmatprep.subr.mxu0 0.0
    %1114 = vmatpush1.msra.mxu0 0.0
    %1115 = vmatprep.subr.mxu0 0.0
    %1116 = vmatpush1.msra.mxu0 0.0
    %1117 = vmatprep.subr.mxu0 0.0
    %1118 = vmatpush1.msra.mxu0 0.0
    %1119 = vmatprep.subr.mxu0 0.0
    %1120 = vmatpush1.msra.mxu0 0.0
    %1121 = vmatprep.subr.mxu0 0.0
    %1122 = vmatpush1.msra.mxu0 0.0
    %1123 = vmatprep.subr.mxu0 0.0
    %1124 = vmatpush1.msra.mxu0 0.0
    %1125 = vmatprep.subr.mxu0 0.0
    %1126 = vmatpush1.msra.mxu0 0.0
    %1127 = vmatprep.subr.mxu0 0.0
    %1128 = vmatpush1.msra.mxu0 0.0
    %1129 = vmatprep.subr.mxu0 0.0
    %1130 = vmatpush1.msra.mxu0 0.0
    %1131 = vmatprep.subr.mxu0 0.0
    %1132 = vmatpush1.msra.mxu0 0.0
    %1133 = vmatprep.subr.mxu0 0.0
    %1134 = vmatpush1.msra.mxu0 0.0
    %1135 = vmatprep.subr.mxu0 0.0
    %1136 = vmatpush1.msra.mxu0 0.0
    %1137 = vmatprep.subr.mxu0 0.0
    %1138 = vmatpush1.msra.mxu0 0.0
    %1139 = vmatprep.subr.mxu0 0.0
    %1140 = vmatpush1.msra.mxu0 0.0
    %1141 = vmatprep.subr.mxu0 0.0
    %1142 = vmatpush1.msra.mxu0 0.0
    %1143 = vmatprep.subr.mxu0 0.0
    %1144 = vmatpush1.msra.mxu0 0.0
    %1145 = vmatprep.subr.mxu0 0.0
    %1146 = vmatpush1.msra.mxu0 0.0
    %1147 = vmatprep.subr.mxu0 0.0
    %1148 = vmatpush1.msra.mxu0 0.0
    %1149 = vmatprep.subr.mxu0 0.0
    %1150 = vmatpush1.msra.mxu0 0.0
    %1151 = vmatprep.subr.mxu0 0.0
    %1152 = vmatpush1.msra.mxu0 0.0
    %1153 = vmatprep.subr.mxu0 0.0
    %1154 = vmatpush1.msra.mxu0 0.0
    %1155 = vmatprep.subr.mxu0 0.0
    %1156 = vmatpush1.msra.mxu0 0.0
    %1157 = vmatprep.subr.mxu0 0.0
    %1158 = vmatpush1.msra.mxu0 0.0
    %1159 = vmatprep.subr.mxu0 0.0
    %1160 = vmatpush1.msra.mxu0 0.0
    %1161 = vmatprep.mubr.f32.mxu0 0.0
    %1162 = vmatmul.mubr.f32.gmra.mrb[0].mxu0 %v1095
    %v1163 = vpop.f32.mrb[0].mxu0
    %v1164 = vadd.f32 0.0, %v1163
    %v1165 = vpop.f32.mrb[0].mxu0
    %1166 = vdwg.mxu0
    %v1167 = vadd.f32 %v1089, %v1164
    %v1168 = vtanh.pop %v1167
    %1169 = vst.msk [vmem:[%s1088] sm:$0xff] %vm251, %v1168
    %s1170 = scalar_lea.vmem [#allocation2], 88
    %v1171 = vld [vmem:[%s1170] sm:$0xff]
    %v1172 = vld [vmem:[%s3] sm:$0xff]
    %v1173 = vld [vmem:[%s3 + $0x8] sm:$0xff]
    %v1174 = vld [vmem:[%s3 + $0x10] sm:$0xff]
    %v1175 = vld [vmem:[%s3 + $0x18] sm:$0xff]
    %v1177 = vsel %vm251, %v1168, 0
    %1179 = vmatprep.subr.mxu0 0.0
    %1180 = vmatpush1.msra.mxu0 %v1172
    %1181 = vmatprep.subr.mxu0 0.0
    %1182 = vmatpush1.msra.mxu0 %v1173
    %1183 = vmatprep.subr.mxu0 0.0
    %1184 = vmatpush1.msra.mxu0 %v1174
    %1185 = vmatprep.subr.mxu0 0.0
    %1186 = vmatpush1.msra.mxu0 %v1175
    %1187 = vmatprep.subr.mxu0 0.0
    %1188 = vmatpush1.msra.mxu0 0.0
    %1189 = vmatprep.subr.mxu0 0.0
    %1190 = vmatpush1.msra.mxu0 0.0
    %1191 = vmatprep.subr.mxu0 0.0
    %1192 = vmatpush1.msra.mxu0 0.0
    %1193 = vmatprep.subr.mxu0 0.0
    %1194 = vmatpush1.msra.mxu0 0.0
    %1195 = vmatprep.subr.mxu0 0.0
    %1196 = vmatpush1.msra.mxu0 0.0
    %1197 = vmatprep.subr.mxu0 0.0
    %1198 = vmatpush1.msra.mxu0 0.0
    %1199 = vmatprep.subr.mxu0 0.0
    %1200 = vmatpush1.msra.mxu0 0.0
    %1201 = vmatprep.subr.mxu0 0.0
    %1202 = vmatpush1.msra.mxu0 0.0
    %1203 = vmatprep.subr.mxu0 0.0
    %1204 = vmatpush1.msra.mxu0 0.0
    %1205 = vmatprep.subr.mxu0 0.0
    %1206 = vmatpush1.msra.mxu0 0.0
    %1207 = vmatprep.subr.mxu0 0.0
    %1208 = vmatpush1.msra.mxu0 0.0
    %1209 = vmatprep.subr.mxu0 0.0
    %1210 = vmatpush1.msra.mxu0 0.0
    %1211 = vmatprep.subr.mxu0 0.0
    %1212 = vmatpush1.msra.mxu0 0.0
    %1213 = vmatprep.subr.mxu0 0.0
    %1214 = vmatpush1.msra.mxu0 0.0
    %1215 = vmatprep.subr.mxu0 0.0
    %1216 = vmatpush1.msra.mxu0 0.0
    %1217 = vmatprep.subr.mxu0 0.0
    %1218 = vmatpush1.msra.mxu0 0.0
    %1219 = vmatprep.subr.mxu0 0.0
    %1220 = vmatpush1.msra.mxu0 0.0
    %1221 = vmatprep.subr.mxu0 0.0
    %1222 = vmatpush1.msra.mxu0 0.0
    %1223 = vmatprep.subr.mxu0 0.0
    %1224 = vmatpush1.msra.mxu0 0.0
    %1225 = vmatprep.subr.mxu0 0.0
    %1226 = vmatpush1.msra.mxu0 0.0
    %1227 = vmatprep.subr.mxu0 0.0
    %1228 = vmatpush1.msra.mxu0 0.0
    %1229 = vmatprep.subr.mxu0 0.0
    %1230 = vmatpush1.msra.mxu0 0.0
    %1231 = vmatprep.subr.mxu0 0.0
    %1232 = vmatpush1.msra.mxu0 0.0
    %1233 = vmatprep.subr.mxu0 0.0
    %1234 = vmatpush1.msra.mxu0 0.0
    %1235 = vmatprep.subr.mxu0 0.0
    %1236 = vmatpush1.msra.mxu0 0.0
    %1237 = vmatprep.subr.mxu0 0.0
    %1238 = vmatpush1.msra.mxu0 0.0
    %1239 = vmatprep.subr.mxu0 0.0
    %1240 = vmatpush1.msra.mxu0 0.0
    %1241 = vmatprep.subr.mxu0 0.0
    %1242 = vmatpush1.msra.mxu0 0.0
    %1243 = vmatprep.mubr.f32.mxu0 0.0
    %1244 = vmatmul.mubr.f32.gmra.mrb[0].mxu0 %v1177
    %v1245 = vpop.f32.mrb[0].mxu0
    %v1246 = vadd.f32 0.0, %v1245
    %v1247 = vpop.f32.mrb[0].mxu0
    %1248 = vdwg.mxu0
    %v1249 = vadd.f32 %v1171, %v1246
    %v1250 = vtanh.pop %v1249
    %1251 = vst.msk [vmem:[%s1170] sm:$0xff] %vm251, %v1250
    %s1252 = scalar_lea.vmem [#allocation2], 96
    %v1253 = vld [vmem:[%s1252] sm:$0xff]
    %v1254 = vld [vmem:[%s3] sm:$0xff]
    %v1255 = vld [vmem:[%s3 + $0x8] sm:$0xff]
    %v1256 = vld [vmem:[%s3 + $0x10] sm:$0xff]
    %v1257 = vld [vmem:[%s3 + $0x18] sm:$0xff]
    %v1259 = vsel %vm251, %v1250, 0
    %1261 = vmatprep.subr.mxu0 0.0
    %1262 = vmatpush1.msra.mxu0 %v1254
    %1263 = vmatprep.subr.mxu0 0.0
    %1264 = vmatpush1.msra.mxu0 %v1255
    %1265 = vmatprep.subr.mxu0 0.0
    %1266 = vmatpush1.msra.mxu0 %v1256
    %1267 = vmatprep.subr.mxu0 0.0
    %1268 = vmatpush1.msra.mxu0 %v1257
    %1269 = vmatprep.subr.mxu0 0.0
    %1270 = vmatpush1.msra.mxu0 0.0
    %1271 = vmatprep.subr.mxu0 0.0
    %1272 = vmatpush1.msra.mxu0 0.0
    %1273 = vmatprep.subr.mxu0 0.0
    %1274 = vmatpush1.msra.mxu0 0.0
    %1275 = vmatprep.subr.mxu0 0.0
    %1276 = vmatpush1.msra.mxu0 0.0
    %1277 = vmatprep.subr.mxu0 0.0
    %1278 = vmatpush1.msra.mxu0 0.0
    %1279 = vmatprep.subr.mxu0 0.0
    %1280 = vmatpush1.msra.mxu0 0.0
    %1281 = vmatprep.subr.mxu0 0.0
    %1282 = vmatpush1.msra.mxu0 0.0
    %1283 = vmatprep.subr.mxu0 0.0
    %1284 = vmatpush1.msra.mxu0 0.0
    %1285 = vmatprep.subr.mxu0 0.0
    %1286 = vmatpush1.msra.mxu0 0.0
    %1287 = vmatprep.subr.mxu0 0.0
    %1288 = vmatpush1.msra.mxu0 0.0
    %1289 = vmatprep.subr.mxu0 0.0
    %1290 = vmatpush1.msra.mxu0 0.0
    %1291 = vmatprep.subr.mxu0 0.0
    %1292 = vmatpush1.msra.mxu0 0.0
    %1293 = vmatprep.subr.mxu0 0.0
    %1294 = vmatpush1.msra.mxu0 0.0
    %1295 = vmatprep.subr.mxu0 0.0
    %1296 = vmatpush1.msra.mxu0 0.0
    %1297 = vmatprep.subr.mxu0 0.0
    %1298 = vmatpush1.msra.mxu0 0.0
    %1299 = vmatprep.subr.mxu0 0.0
    %1300 = vmatpush1.msra.mxu0 0.0
    %1301 = vmatprep.subr.mxu0 0.0
    %1302 = vmatpush1.msra.mxu0 0.0
    %1303 = vmatprep.subr.mxu0 0.0
    %1304 = vmatpush1.msra.mxu0 0.0
    %1305 = vmatprep.subr.mxu0 0.0
    %1306 = vmatpush1.msra.mxu0 0.0
    %1307 = vmatprep.subr.mxu0 0.0
    %1308 = vmatpush1.msra.mxu0 0.0
    %1309 = vmatprep.subr.mxu0 0.0
    %1310 = vmatpush1.msra.mxu0 0.0
    %1311 = vmatprep.subr.mxu0 0.0
    %1312 = vmatpush1.msra.mxu0 0.0
    %1313 = vmatprep.subr.mxu0 0.0
    %1314 = vmatpush1.msra.mxu0 0.0
    %1315 = vmatprep.subr.mxu0 0.0
    %1316 = vmatpush1.msra.mxu0 0.0
    %1317 = vmatprep.subr.mxu0 0.0
    %1318 = vmatpush1.msra.mxu0 0.0
    %1319 = vmatprep.subr.mxu0 0.0
    %1320 = vmatpush1.msra.mxu0 0.0
    %1321 = vmatprep.subr.mxu0 0.0
    %1322 = vmatpush1.msra.mxu0 0.0
    %1323 = vmatprep.subr.mxu0 0.0
    %1324 = vmatpush1.msra.mxu0 0.0
    %1325 = vmatprep.mubr.f32.mxu0 0.0
    %1326 = vmatmul.mubr.f32.gmra.mrb[0].mxu0 %v1259
    %v1327 = vpop.f32.mrb[0].mxu0
    %v1328 = vadd.f32 0.0, %v1327
    %v1329 = vpop.f32.mrb[0].mxu0
    %1330 = vdwg.mxu0
    %v1331 = vadd.f32 %v1253, %v1328
    %v1332 = vtanh.pop %v1331
    %1333 = vst.msk [vmem:[%s1252] sm:$0xff] %vm251, %v1332
    %s1334 = scalar_lea.vmem [#allocation2], 104
    %v1335 = vld [vmem:[%s1334] sm:$0xff]
    %v1336 = vld [vmem:[%s3] sm:$0xff]
    %v1337 = vld [vmem:[%s3 + $0x8] sm:$0xff]
    %v1338 = vld [vmem:[%s3 + $0x10] sm:$0xff]
    %v1339 = vld [vmem:[%s3 + $0x18] sm:$0xff]
    %v1341 = vsel %vm251, %v1332, 0
    %1343 = vmatprep.subr.mxu0 0.0
    %1344 = vmatpush1.msra.mxu0 %v1336
    %1345 = vmatprep.subr.mxu0 0.0
    %1346 = vmatpush1.msra.mxu0 %v1337
    %1347 = vmatprep.subr.mxu0 0.0
    %1348 = vmatpush1.msra.mxu0 %v1338
    %1349 = vmatprep.subr.mxu0 0.0
    %1350 = vmatpush1.msra.mxu0 %v1339
    %1351 = vmatprep.subr.mxu0 0.0
    %1352 = vmatpush1.msra.mxu0 0.0
    %1353 = vmatprep.subr.mxu0 0.0
    %1354 = vmatpush1.msra.mxu0 0.0
    %1355 = vmatprep.subr.mxu0 0.0
    %1356 = vmatpush1.msra.mxu0 0.0
    %1357 = vmatprep.subr.mxu0 0.0
    %1358 = vmatpush1.msra.mxu0 0.0
    %1359 = vmatprep.subr.mxu0 0.0
    %1360 = vmatpush1.msra.mxu0 0.0
    %1361 = vmatprep.subr.mxu0 0.0
    %1362 = vmatpush1.msra.mxu0 0.0
    %1363 = vmatprep.subr.mxu0 0.0
    %1364 = vmatpush1.msra.mxu0 0.0
    %1365 = vmatprep.subr.mxu0 0.0
    %1366 = vmatpush1.msra.mxu0 0.0
    %1367 = vmatprep.subr.mxu0 0.0
    %1368 = vmatpush1.msra.mxu0 0.0
    %1369 = vmatprep.subr.mxu0 0.0
    %1370 = vmatpush1.msra.mxu0 0.0
    %1371 = vmatprep.subr.mxu0 0.0
    %1372 = vmatpush1.msra.mxu0 0.0
    %1373 = vmatprep.subr.mxu0 0.0
    %1374 = vmatpush1.msra.mxu0 0.0
    %1375 = vmatprep.subr.mxu0 0.0
    %1376 = vmatpush1.msra.mxu0 0.0
    %1377 = vmatprep.subr.mxu0 0.0
    %1378 = vmatpush1.msra.mxu0 0.0
    %1379 = vmatprep.subr.mxu0 0.0
    %1380 = vmatpush1.msra.mxu0 0.0
    %1381 = vmatprep.subr.mxu0 0.0
    %1382 = vmatpush1.msra.mxu0 0.0
    %1383 = vmatprep.subr.mxu0 0.0
    %1384 = vmatpush1.msra.mxu0 0.0
    %1385 = vmatprep.subr.mxu0 0.0
    %1386 = vmatpush1.msra.mxu0 0.0
    %1387 = vmatprep.subr.mxu0 0.0
    %1388 = vmatpush1.msra.mxu0 0.0
    %1389 = vmatprep.subr.mxu0 0.0
    %1390 = vmatpush1.msra.mxu0 0.0
    %1391 = vmatprep.subr.mxu0 0.0
    %1392 = vmatpush1.msra.mxu0 0.0
    %1393 = vmatprep.subr.mxu0 0.0
    %1394 = vmatpush1.msra.mxu0 0.0
    %1395 = vmatprep.subr.mxu0 0.0
    %1396 = vmatpush1.msra.mxu0 0.0
    %1397 = vmatprep.subr.mxu0 0.0
    %1398 = vmatpush1.msra.mxu0 0.0
    %1399 = vmatprep.subr.mxu0 0.0
    %1400 = vmatpush1.msra.mxu0 0.0
    %1401 = vmatprep.subr.mxu0 0.0
    %1402 = vmatpush1.msra.mxu0 0.0
    %1403 = vmatprep.subr.mxu0 0.0
    %1404 = vmatpush1.msra.mxu0 0.0
    %1405 = vmatprep.subr.mxu0 0.0
    %1406 = vmatpush1.msra.mxu0 0.0
    %1407 = vmatprep.mubr.f32.mxu0 0.0
    %1408 = vmatmul.mubr.f32.gmra.mrb[0].mxu0 %v1341
    %v1409 = vpop.f32.mrb[0].mxu0
    %v1410 = vadd.f32 0.0, %v1409
    %v1411 = vpop.f32.mrb[0].mxu0
    %1412 = vdwg.mxu0
    %v1413 = vadd.f32 %v1335, %v1410
    %v1414 = vtanh.pop %v1413
    %1415 = vst.msk [vmem:[%s1334] sm:$0xff] %vm251, %v1414
    %s1416 = scalar_lea.vmem [#allocation2], 112
    %v1417 = vld [vmem:[%s1416] sm:$0xff]
    %v1418 = vld [vmem:[%s3] sm:$0xff]
    %v1419 = vld [vmem:[%s3 + $0x8] sm:$0xff]
    %v1420 = vld [vmem:[%s3 + $0x10] sm:$0xff]
    %v1421 = vld [vmem:[%s3 + $0x18] sm:$0xff]
    %v1423 = vsel %vm251, %v1414, 0
    %1425 = vmatprep.subr.mxu0 0.0
    %1426 = vmatpush1.msra.mxu0 %v1418
    %1427 = vmatprep.subr.mxu0 0.0
    %1428 = vmatpush1.msra.mxu0 %v1419
    %1429 = vmatprep.subr.mxu0 0.0
    %1430 = vmatpush1.msra.mxu0 %v1420
    %1431 = vmatprep.subr.mxu0 0.0
    %1432 = vmatpush1.msra.mxu0 %v1421
    %1433 = vmatprep.subr.mxu0 0.0
    %1434 = vmatpush1.msra.mxu0 0.0
    %1435 = vmatprep.subr.mxu0 0.0
    %1436 = vmatpush1.msra.mxu0 0.0
    %1437 = vmatprep.subr.mxu0 0.0
    %1438 = vmatpush1.msra.mxu0 0.0
    %1439 = vmatprep.subr.mxu0 0.0
    %1440 = vmatpush1.msra.mxu0 0.0
    %1441 = vmatprep.subr.mxu0 0.0
    %1442 = vmatpush1.msra.mxu0 0.0
    %1443 = vmatprep.subr.mxu0 0.0
    %1444 = vmatpush1.msra.mxu0 0.0
    %1445 = vmatprep.subr.mxu0 0.0
    %1446 = vmatpush1.msra.mxu0 0.0
    %1447 = vmatprep.subr.mxu0 0.0
    %1448 = vmatpush1.msra.mxu0 0.0
    %1449 = vmatprep.subr.mxu0 0.0
    %1450 = vmatpush1.msra.mxu0 0.0
    %1451 = vmatprep.subr.mxu0 0.0
    %1452 = vmatpush1.msra.mxu0 0.0
    %1453 = vmatprep.subr.mxu0 0.0
    %1454 = vmatpush1.msra.mxu0 0.0
    %1455 = vmatprep.subr.mxu0 0.0
    %1456 = vmatpush1.msra.mxu0 0.0
    %1457 = vmatprep.subr.mxu0 0.0
    %1458 = vmatpush1.msra.mxu0 0.0
    %1459 = vmatprep.subr.mxu0 0.0
    %1460 = vmatpush1.msra.mxu0 0.0
    %1461 = vmatprep.subr.mxu0 0.0
    %1462 = vmatpush1.msra.mxu0 0.0
    %1463 = vmatprep.subr.mxu0 0.0
    %1464 = vmatpush1.msra.mxu0 0.0
    %1465 = vmatprep.subr.mxu0 0.0
    %1466 = vmatpush1.msra.mxu0 0.0
    %1467 = vmatprep.subr.mxu0 0.0
    %1468 = vmatpush1.msra.mxu0 0.0
    %1469 = vmatprep.subr.mxu0 0.0
    %1470 = vmatpush1.msra.mxu0 0.0
    %1471 = vmatprep.subr.mxu0 0.0
    %1472 = vmatpush1.msra.mxu0 0.0
    %1473 = vmatprep.subr.mxu0 0.0
    %1474 = vmatpush1.msra.mxu0 0.0
    %1475 = vmatprep.subr.mxu0 0.0
    %1476 = vmatpush1.msra.mxu0 0.0
    %1477 = vmatprep.subr.mxu0 0.0
    %1478 = vmatpush1.msra.mxu0 0.0
    %1479 = vmatprep.subr.mxu0 0.0
    %1480 = vmatpush1.msra.mxu0 0.0
    %1481 = vmatprep.subr.mxu0 0.0
    %1482 = vmatpush1.msra.mxu0 0.0
    %1483 = vmatprep.subr.mxu0 0.0
    %1484 = vmatpush1.msra.mxu0 0.0
    %1485 = vmatprep.subr.mxu0 0.0
    %1486 = vmatpush1.msra.mxu0 0.0
    %1487 = vmatprep.subr.mxu0 0.0
    %1488 = vmatpush1.msra.mxu0 0.0
    %1489 = vmatprep.mubr.f32.mxu0 0.0
    %1490 = vmatmul.mubr.f32.gmra.mrb[0].mxu0 %v1423
    %v1491 = vpop.f32.mrb[0].mxu0
    %v1492 = vadd.f32 0.0, %v1491
    %v1493 = vpop.f32.mrb[0].mxu0
    %1494 = vdwg.mxu0
    %v1495 = vadd.f32 %v1417, %v1492
    %v1496 = vtanh.pop %v1495
    %1497 = vst.msk [vmem:[%s1416] sm:$0xff] %vm251, %v1496
    %s1498 = scalar_lea.vmem [#allocation2], 120
    %v1499 = vld [vmem:[%s1498] sm:$0xff]
    %v1500 = vld [vmem:[%s3] sm:$0xff]
    %v1501 = vld [vmem:[%s3 + $0x8] sm:$0xff]
    %v1502 = vld [vmem:[%s3 + $0x10] sm:$0xff]
    %v1503 = vld [vmem:[%s3 + $0x18] sm:$0xff]
    %v1505 = vsel %vm251, %v1496, 0
    %1507 = vmatprep.subr.mxu0 0.0
    %1508 = vmatpush1.msra.mxu0 %v1500
    %1509 = vmatprep.subr.mxu0 0.0
    %1510 = vmatpush1.msra.mxu0 %v1501
    %1511 = vmatprep.subr.mxu0 0.0
    %1512 = vmatpush1.msra.mxu0 %v1502
    %1513 = vmatprep.subr.mxu0 0.0
    %1514 = vmatpush1.msra.mxu0 %v1503
    %1515 = vmatprep.subr.mxu0 0.0
    %1516 = vmatpush1.msra.mxu0 0.0
    %1517 = vmatprep.subr.mxu0 0.0
    %1518 = vmatpush1.msra.mxu0 0.0
    %1519 = vmatprep.subr.mxu0 0.0
    %1520 = vmatpush1.msra.mxu0 0.0
    %1521 = vmatprep.subr.mxu0 0.0
    %1522 = vmatpush1.msra.mxu0 0.0
    %1523 = vmatprep.subr.mxu0 0.0
    %1524 = vmatpush1.msra.mxu0 0.0
    %1525 = vmatprep.subr.mxu0 0.0
    %1526 = vmatpush1.msra.mxu0 0.0
    %1527 = vmatprep.subr.mxu0 0.0
    %1528 = vmatpush1.msra.mxu0 0.0
    %1529 = vmatprep.subr.mxu0 0.0
    %1530 = vmatpush1.msra.mxu0 0.0
    %1531 = vmatprep.subr.mxu0 0.0
    %1532 = vmatpush1.msra.mxu0 0.0
    %1533 = vmatprep.subr.mxu0 0.0
    %1534 = vmatpush1.msra.mxu0 0.0
    %1535 = vmatprep.subr.mxu0 0.0
    %1536 = vmatpush1.msra.mxu0 0.0
    %1537 = vmatprep.subr.mxu0 0.0
    %1538 = vmatpush1.msra.mxu0 0.0
    %1539 = vmatprep.subr.mxu0 0.0
    %1540 = vmatpush1.msra.mxu0 0.0
    %1541 = vmatprep.subr.mxu0 0.0
    %1542 = vmatpush1.msra.mxu0 0.0
    %1543 = vmatprep.subr.mxu0 0.0
    %1544 = vmatpush1.msra.mxu0 0.0
    %1545 = vmatprep.subr.mxu0 0.0
    %1546 = vmatpush1.msra.mxu0 0.0
    %1547 = vmatprep.subr.mxu0 0.0
    %1548 = vmatpush1.msra.mxu0 0.0
    %1549 = vmatprep.subr.mxu0 0.0
    %1550 = vmatpush1.msra.mxu0 0.0
    %1551 = vmatprep.subr.mxu0 0.0
    %1552 = vmatpush1.msra.mxu0 0.0
    %1553 = vmatprep.subr.mxu0 0.0
    %1554 = vmatpush1.msra.mxu0 0.0
    %1555 = vmatprep.subr.mxu0 0.0
    %1556 = vmatpush1.msra.mxu0 0.0
    %1557 = vmatprep.subr.mxu0 0.0
    %1558 = vmatpush1.msra.mxu0 0.0
    %1559 = vmatprep.subr.mxu0 0.0
    %1560 = vmatpush1.msra.mxu0 0.0
    %1561 = vmatprep.subr.mxu0 0.0
    %1562 = vmatpush1.msra.mxu0 0.0
    %1563 = vmatprep.subr.mxu0 0.0
    %1564 = vmatpush1.msra.mxu0 0.0
    %1565 = vmatprep.subr.mxu0 0.0
    %1566 = vmatpush1.msra.mxu0 0.0
    %1567 = vmatprep.subr.mxu0 0.0
    %1568 = vmatpush1.msra.mxu0 0.0
    %1569 = vmatprep.subr.mxu0 0.0
    %1570 = vmatpush1.msra.mxu0 0.0
    %1571 = vmatprep.mubr.f32.mxu0 0.0
    %1572 = vmatmul.mubr.f32.gmra.mrb[0].mxu0 %v1505
    %v1573 = vpop.f32.mrb[0].mxu0
    %v1574 = vadd.f32 0.0, %v1573
    %v1575 = vpop.f32.mrb[0].mxu0
    %1576 = vdwg.mxu0
    %v1577 = vadd.f32 %v1499, %v1574
    %v1578 = vtanh.pop %v1577
    %1579 = vst.msk [vmem:[%s1498] sm:$0xff] %vm251, %v1578
    %v1580 = vld [vmem:[#allocation2] sm:$0xff]
    %v1581 = vld [vmem:[#allocation2 + $0x8] sm:$0xff]
    %v1582 = vld [vmem:[#allocation2 + $0x10] sm:$0xff]
    %v1583 = vld [vmem:[#allocation2 + $0x18] sm:$0xff]
    %v1584 = vld [vmem:[#allocation2 + $0x20] sm:$0xff]
    %v1585 = vld [vmem:[#allocation2 + $0x28] sm:$0xff]
    %v1586 = vld [vmem:[#allocation2 + $0x30] sm:$0xff]
    %v1587 = vld [vmem:[#allocation2 + $0x38] sm:$0xff]
    %v1588 = vld [vmem:[#allocation2 + $0x40] sm:$0xff]
    %v1589 = vld [vmem:[#allocation2 + $0x48] sm:$0xff]
    %v1590 = vld [vmem:[#allocation2 + $0x50] sm:$0xff]
    %v1591 = vld [vmem:[#allocation2 + $0x58] sm:$0xff]
    %v1592 = vld [vmem:[#allocation2 + $0x60] sm:$0xff]
    %v1593 = vld [vmem:[#allocation2 + $0x68] sm:$0xff]
    %v1594 = vld [vmem:[#allocation2 + $0x70] sm:$0xff]
    %v1595 = vld [vmem:[#allocation2 + $0x78] sm:$0xff]
    %v1596 = vld [vmem:[%s5] sm:$0xff]
    %v1597 = vld [vmem:[%s5 + $0x8] sm:$0xff]
    %v1598 = vld [vmem:[%s5 + $0x10] sm:$0xff]
    %v1599 = vld [vmem:[%s5 + $0x18] sm:$0xff]
    %v1600 = vld [vmem:[%s6] sm:$0x1]
    %v1602 = vlaneseq
    %v1603 = vshrl.u32 %v1602, 7
    %v1604 = vsub.s32 0, %v1603
    %v1605 = vrot.slane %v1600, %v1604
    %v1608 = vsel %vm251, %v1580, 0
    %v1611 = vsel %vm251, %v1581, 0
    %v1614 = vsel %vm251, %v1582, 0
    %v1617 = vsel %vm251, %v1583, 0
    %v1620 = vsel %vm251, %v1584, 0
    %v1623 = vsel %vm251, %v1585, 0
    %v1626 = vsel %vm251, %v1586, 0
    %v1629 = vsel %vm251, %v1587, 0
    %v1632 = vsel %vm251, %v1588, 0
    %v1635 = vsel %vm251, %v1589, 0
    %v1638 = vsel %vm251, %v1590, 0
    %v1641 = vsel %vm251, %v1591, 0
    %v1644 = vsel %vm251, %v1592, 0
    %v1647 = vsel %vm251, %v1593, 0
    %v1650 = vsel %vm251, %v1594, 0
    %v1653 = vsel %vm251, %v1595, 0
    %1655 = vmatprep.subr.mxu0 0.0
    %1656 = vmatpush1.msra.mxu0 %v1596
    %1657 = vmatprep.subr.mxu0 0.0
    %1658 = vmatpush1.msra.mxu0 %v1597
    %1659 = vmatprep.subr.mxu0 0.0
    %1660 = vmatpush1.msra.mxu0 %v1598
    %1661 = vmatprep.subr.mxu0 0.0
    %1662 = vmatpush1.msra.mxu0 %v1599
    %1663 = vmatprep.subr.mxu0 0.0
    %1664 = vmatpush1.msra.mxu0 0.0
    %1665 = vmatprep.subr.mxu0 0.0
    %1666 = vmatpush1.msra.mxu0 0.0
    %1667 = vmatprep.subr.mxu0 0.0
    %1668 = vmatpush1.msra.mxu0 0.0
    %1669 = vmatprep.subr.mxu0 0.0
    %1670 = vmatpush1.msra.mxu0 0.0
    %1671 = vmatprep.subr.mxu0 0.0
    %1672 = vmatpush1.msra.mxu0 0.0
    %1673 = vmatprep.subr.mxu0 0.0
    %1674 = vmatpush1.msra.mxu0 0.0
    %1675 = vmatprep.subr.mxu0 0.0
    %1676 = vmatpush1.msra.mxu0 0.0
    %1677 = vmatprep.subr.mxu0 0.0
    %1678 = vmatpush1.msra.mxu0 0.0
    %1679 = vmatprep.subr.mxu0 0.0
    %1680 = vmatpush1.msra.mxu0 0.0
    %1681 = vmatprep.subr.mxu0 0.0
    %1682 = vmatpush1.msra.mxu0 0.0
    %1683 = vmatprep.subr.mxu0 0.0
    %1684 = vmatpush1.msra.mxu0 0.0
    %1685 = vmatprep.subr.mxu0 0.0
    %1686 = vmatpush1.msra.mxu0 0.0
    %1687 = vmatprep.subr.mxu0 0.0
    %1688 = vmatpush1.msra.mxu0 0.0
    %1689 = vmatprep.subr.mxu0 0.0
    %1690 = vmatpush1.msra.mxu0 0.0
    %1691 = vmatprep.subr.mxu0 0.0
    %1692 = vmatpush1.msra.mxu0 0.0
    %1693 = vmatprep.subr.mxu0 0.0
    %1694 = vmatpush1.msra.mxu0 0.0
    %1695 = vmatprep.subr.mxu0 0.0
    %1696 = vmatpush1.msra.mxu0 0.0
    %1697 = vmatprep.subr.mxu0 0.0
    %1698 = vmatpush1.msra.mxu0 0.0
    %1699 = vmatprep.subr.mxu0 0.0
    %1700 = vmatpush1.msra.mxu0 0.0
    %1701 = vmatprep.subr.mxu0 0.0
    %1702 = vmatpush1.msra.mxu0 0.0
    %1703 = vmatprep.subr.mxu0 0.0
    %1704 = vmatpush1.msra.mxu0 0.0
    %1705 = vmatprep.subr.mxu0 0.0
    %1706 = vmatpush1.msra.mxu0 0.0
    %1707 = vmatprep.subr.mxu0 0.0
    %1708 = vmatpush1.msra.mxu0 0.0
    %1709 = vmatprep.subr.mxu0 0.0
    %1710 = vmatpush1.msra.mxu0 0.0
    %1711 = vmatprep.subr.mxu0 0.0
    %1712 = vmatpush1.msra.mxu0 0.0
    %1713 = vmatprep.subr.mxu0 0.0
    %1714 = vmatpush1.msra.mxu0 0.0
    %1715 = vmatprep.subr.mxu0 0.0
    %1716 = vmatpush1.msra.mxu0 0.0
    %1717 = vmatprep.subr.mxu0 0.0
    %1718 = vmatpush1.msra.mxu0 0.0
    %1719 = vmatprep.mubr.f32.mxu0 0.0
    %1720 = vmatmul.mubr.f32.gmra.mrb[0].mxu0 %v1608
    %v1721 = vpop.f32.mrb[0].mxu0
    %v1722 = vadd.f32 %v1605, %v1721
    %v1723 = vpop.f32.mrb[0].mxu0
    %1724 = vmatprep.mubr.f32.mxu0 0.0
    %1725 = vmatmul.mubr.f32.gmra.mrb[0].mxu0 %v1611
    %v1726 = vpop.f32.mrb[0].mxu0
    %v1727 = vadd.f32 %v1605, %v1726
    %v1728 = vpop.f32.mrb[0].mxu0
    %1729 = vmatprep.mubr.f32.mxu0 0.0
    %1730 = vmatmul.mubr.f32.gmra.mrb[0].mxu0 %v1614
    %v1731 = vpop.f32.mrb[0].mxu0
    %v1732 = vadd.f32 %v1605, %v1731
    %v1733 = vpop.f32.mrb[0].mxu0
    %1734 = vmatprep.mubr.f32.mxu0 0.0
    %1735 = vmatmul.mubr.f32.gmra.mrb[0].mxu0 %v1617
    %v1736 = vpop.f32.mrb[0].mxu0
    %v1737 = vadd.f32 %v1605, %v1736
    %v1738 = vpop.f32.mrb[0].mxu0
    %1739 = vmatprep.mubr.f32.mxu0 0.0
    %1740 = vmatmul.mubr.f32.gmra.mrb[0].mxu0 %v1620
    %v1741 = vpop.f32.mrb[0].mxu0
    %v1742 = vadd.f32 %v1605, %v1741
    %v1743 = vpop.f32.mrb[0].mxu0
    %1744 = vmatprep.mubr.f32.mxu0 0.0
    %1745 = vmatmul.mubr.f32.gmra.mrb[0].mxu0 %v1623
    %v1746 = vpop.f32.mrb[0].mxu0
    %v1747 = vadd.f32 %v1605, %v1746
    %v1748 = vpop.f32.mrb[0].mxu0
    %1749 = vmatprep.mubr.f32.mxu0 0.0
    %1750 = vmatmul.mubr.f32.gmra.mrb[0].mxu0 %v1626
    %v1751 = vpop.f32.mrb[0].mxu0
    %v1752 = vadd.f32 %v1605, %v1751
    %v1753 = vpop.f32.mrb[0].mxu0
    %1754 = vmatprep.mubr.f32.mxu0 0.0
    %1755 = vmatmul.mubr.f32.gmra.mrb[0].mxu0 %v1629
    %v1756 = vpop.f32.mrb[0].mxu0
    %v1757 = vadd.f32 %v1605, %v1756
    %v1758 = vpop.f32.mrb[0].mxu0
    %1759 = vmatprep.mubr.f32.mxu0 0.0
    %1760 = vmatmul.mubr.f32.gmra.mrb[0].mxu0 %v1632
    %v1761 = vpop.f32.mrb[0].mxu0
    %v1762 = vadd.f32 %v1605, %v1761
    %v1763 = vpop.f32.mrb[0].mxu0
    %1764 = vmatprep.mubr.f32.mxu0 0.0
    %1765 = vmatmul.mubr.f32.gmra.mrb[0].mxu0 %v1635
    %v1766 = vpop.f32.mrb[0].mxu0
    %v1767 = vadd.f32 %v1605, %v1766
    %v1768 = vpop.f32.mrb[0].mxu0
    %1769 = vmatprep.mubr.f32.mxu0 0.0
    %1770 = vmatmul.mubr.f32.gmra.mrb[0].mxu0 %v1638
    %v1771 = vpop.f32.mrb[0].mxu0
    %v1772 = vadd.f32 %v1605, %v1771
    %v1773 = vpop.f32.mrb[0].mxu0
    %1774 = vmatprep.mubr.f32.mxu0 0.0
    %1775 = vmatmul.mubr.f32.gmra.mrb[0].mxu0 %v1641
    %v1776 = vpop.f32.mrb[0].mxu0
    %v1777 = vadd.f32 %v1605, %v1776
    %v1778 = vpop.f32.mrb[0].mxu0
    %1779 = vmatprep.mubr.f32.mxu0 0.0
    %1780 = vmatmul.mubr.f32.gmra.mrb[0].mxu0 %v1644
    %v1781 = vpop.f32.mrb[0].mxu0
    %v1782 = vadd.f32 %v1605, %v1781
    %v1783 = vpop.f32.mrb[0].mxu0
    %1784 = vmatprep.mubr.f32.mxu0 0.0
    %1785 = vmatmul.mubr.f32.gmra.mrb[0].mxu0 %v1647
    %v1786 = vpop.f32.mrb[0].mxu0
    %v1787 = vadd.f32 %v1605, %v1786
    %v1788 = vpop.f32.mrb[0].mxu0
    %1789 = vmatprep.mubr.f32.mxu0 0.0
    %1790 = vmatmul.mubr.f32.gmra.mrb[0].mxu0 %v1650
    %v1791 = vpop.f32.mrb[0].mxu0
    %v1792 = vadd.f32 %v1605, %v1791
    %v1793 = vpop.f32.mrb[0].mxu0
    %1794 = vmatprep.mubr.f32.mxu0 0.0
    %1795 = vmatmul.mubr.f32.gmra.mrb[0].mxu0 %v1653
    %v1796 = vpop.f32.mrb[0].mxu0
    %v1797 = vadd.f32 %v1605, %v1796
    %v1798 = vpop.f32.mrb[0].mxu0
    %1799 = vdwg.mxu0
    %vm1800 = vcmask 31744
    %1801 = vst.msk [vmem:[%s7] sm:$0xff] %vm1800, %v1722
    %1802 = vst.msk [vmem:[%s7 + $0x8] sm:$0xff] %vm1800, %v1727
    %1803 = vst.msk [vmem:[%s7 + $0x10] sm:$0xff] %vm1800, %v1732
    %1804 = vst.msk [vmem:[%s7 + $0x18] sm:$0xff] %vm1800, %v1737
    %1805 = vst.msk [vmem:[%s7 + $0x20] sm:$0xff] %vm1800, %v1742
    %1806 = vst.msk [vmem:[%s7 + $0x28] sm:$0xff] %vm1800, %v1747
    %1807 = vst.msk [vmem:[%s7 + $0x30] sm:$0xff] %vm1800, %v1752
    %1808 = vst.msk [vmem:[%s7 + $0x38] sm:$0xff] %vm1800, %v1757
    %1809 = vst.msk [vmem:[%s7 + $0x40] sm:$0xff] %vm1800, %v1762
    %1810 = vst.msk [vmem:[%s7 + $0x48] sm:$0xff] %vm1800, %v1767
    %1811 = vst.msk [vmem:[%s7 + $0x50] sm:$0xff] %vm1800, %v1772
    %1812 = vst.msk [vmem:[%s7 + $0x58] sm:$0xff] %vm1800, %v1777
    %1813 = vst.msk [vmem:[%s7 + $0x60] sm:$0xff] %vm1800, %v1782
    %1814 = vst.msk [vmem:[%s7 + $0x68] sm:$0xff] %vm1800, %v1787
    %1815 = vst.msk [vmem:[%s7 + $0x70] sm:$0xff] %vm1800, %v1792
    %1816 = vst.msk [vmem:[%s7 + $0x78] sm:$0xff] %vm1800, %v1797
    %1817 = vst.msk [vmem:[#allocation3] sm:$0xff] %vm251, %v1578
    // Predicated region
    $region30: #{tpu_custom_call.1} parent=1 // pred_check
      _
    $region31: #{tpu_custom_call.1} parent=1 // pred_check_branch
      %1819 = sbr.rel (0) target = $region33
    $region32: #{tpu_custom_call.1} parent=1 // pred_region
      _
    $region33: #{tpu_custom_call.1} parent=1 // pred_fallthru
      _
    // Predicated region
    $region34: #{tpu_custom_call.1} parent=1 // pred_check
      _
    $region35: #{tpu_custom_call.1} parent=1 // pred_check_branch
      %1821 = sbr.rel (0) target = $region37
    $region36: #{tpu_custom_call.1} parent=1 // pred_region
      %s1823 = ssub.s32 128, 128
      %1824 = vsyncadd [#allocation4], %s1823
      %s1826 = sshll.u32 [#allocation3], 4
      %s1827 = int_to_ptr.vmem [resolvable:$true] %s1826
      %1829 = dma.vmem_to_hbm [thread:$0]  %s1827, 128, %s8, [#allocation4]
    $region37: #{tpu_custom_call.1} parent=1 // pred_fallthru
      _
    // Predicated region
    $region38: #{tpu_custom_call.1} parent=1 // pred_check
      _
    $region39: #{tpu_custom_call.1} parent=1 // pred_check_branch
      %1831 = sbr.rel (0) target = $region41
    $region40: #{tpu_custom_call.1} parent=1 // pred_region
      _
    $region41: #{tpu_custom_call.1} parent=1 // pred_fallthru
      _
    // Predicated region
    $region42: #{tpu_custom_call.1} parent=1 // pred_check
      _
    $region43: #{tpu_custom_call.1} parent=1 // pred_check_branch
      %1833 = sbr.rel (0) target = $region45
    $region44: #{tpu_custom_call.1} parent=1 // pred_region
      %1834 = dma.done [#allocation4], 128
    $region45: #{tpu_custom_call.1} parent=1 // pred_fallthru
      _
    %1835 = vsyncpa [#allocation4], 1

</llo_original>
